<compile_context>
chip_gen: v5e
topology: v5e:2x2
jax: 0.10.0
libtpu: 0.0.40
codegen_flags: <defaults>
</compile_context>

<pallas_src>
import functools

import jax
import jax.numpy as jnp
from jax.experimental import pallas as pl
from jax.experimental.pallas import tpu as pltpu

LRELU_SLOPE = 0.2
BN_EPS = 1e-5
KW = 4            # kernel size
PADW = 2          # int(ceil((4 - 1) / 2))

TM_CAP = 512      # rows (M = N*OH*OW) per tile
TK_CAP = 1024     # contraction (K = 16*Cin) per tile
TN_CAP = 512      # output channels per tile (full Cout for ndf<=64 -> gn=1)


def _round_up(x, m):
    return (x + m - 1) // m * m


@functools.lru_cache(maxsize=None)
def _vmem_limit_bytes():
    """Generation-aware VMEM budget: ~cap-16MiB, clamped to [32 MiB, 100 MiB]."""
    cap = 64 * 1024 * 1024
    try:
        get_info = getattr(pltpu, "get_tpu_info", None)
        if get_info is not None:
            cap = int(getattr(get_info(), "vmem_capacity_bytes", cap))
    except Exception:
        pass
    return int(max(32 * 1024 * 1024, min(cap - 16 * 1024 * 1024, 100 * 1024 * 1024)))


# ---------------------------------------------------------------------------
# Pallas kernels
# ---------------------------------------------------------------------------
def _matmul_bias_kernel(apply_lrelu, p_ref, wt_ref, b_ref, o_ref, acc_ref):
    """Tiled matmul with bias (+ optional LeakyReLU) applied only in the K-finalize."""
    k = pl.program_id(2)

    @pl.when(k == 0)
    def _():
        acc_ref[...] = jnp.zeros_like(acc_ref)

    acc_ref[...] += jnp.dot(p_ref[...], wt_ref[...],
                            preferred_element_type=jnp.float32)

    @pl.when(k == pl.num_programs(2) - 1)
    def _():
        y = acc_ref[...] + b_ref[...]
        if apply_lrelu:
            y = jnp.maximum(y, LRELU_SLOPE * y)
        o_ref[...] = y.astype(o_ref.dtype)


def _matmul_stats_kernel(p_ref, wt_ref, o_ref, sum_ref, sq_ref, acc_ref):
    """Tiled matmul (no bias) emitting per-(M-tile, Cout-tile) partial channel stats.

    Each (i, j) grid block writes its own (1, 1, TN) partial sum / sum-of-squares
    (from the f32 accumulator) at the last K step; partials are reduced over the
    M-tile axis in JAX glue.  Both M and Cout grid axes stay "parallel".
    """
    k = pl.program_id(2)

    @pl.when(k == 0)
    def _():
        acc_ref[...] = jnp.zeros_like(acc_ref)

    acc_ref[...] += jnp.dot(p_ref[...], wt_ref[...],
                            preferred_element_type=jnp.float32)

    @pl.when(k == pl.num_programs(2) - 1)
    def _():
        y = acc_ref[...]
        o_ref[...] = y.astype(o_ref.dtype)
        sum_ref[...] = jnp.sum(y, axis=0, keepdims=True).reshape(sum_ref.shape)
        sq_ref[...] = jnp.sum(y * y, axis=0, keepdims=True).reshape(sq_ref.shape)


def _bn_lrelu_kernel(y_ref, scale_ref, shift_ref, o_ref):
    """Elementwise BatchNorm (pre-folded scale/shift) + LeakyReLU, f32 math, bf16 I/O."""
    z = y_ref[...].astype(jnp.float32) * scale_ref[...] + shift_ref[...]
    z = jnp.maximum(z, LRELU_SLOPE * z)
    o_ref[...] = z.astype(o_ref.dtype)


# ---------------------------------------------------------------------------
# pallas_call drivers
# ---------------------------------------------------------------------------
def _conv_bias_call(patches_p, wt_p, b_p, TM, TN, TK, apply_lrelu, out_dtype):
    M_pad, K_pad = patches_p.shape
    N_pad = wt_p.shape[1]
    gm, gn, gk = M_pad // TM, N_pad // TN, K_pad // TK
    in_bytes = patches_p.dtype.itemsize
    out_bytes = jnp.dtype(out_dtype).itemsize
    return pl.pallas_call(
        functools.partial(_matmul_bias_kernel, apply_lrelu),
        grid=(gm, gn, gk),
        in_specs=[pl.BlockSpec((TM, TK), lambda i, j, k: (i, k)),
                  pl.BlockSpec((TK, TN), lambda i, j, k: (k, j)),
                  pl.BlockSpec((1, TN), lambda i, j, k: (0, j))],
        out_specs=pl.BlockSpec((TM, TN), lambda i, j, k: (i, j)),
        out_shape=jax.ShapeDtypeStruct((M_pad, N_pad), out_dtype),
        scratch_shapes=[pltpu.VMEM((TM, TN), jnp.float32)],
        compiler_params=pltpu.CompilerParams(
            dimension_semantics=("parallel", "parallel", "arbitrary"),
            vmem_limit_bytes=_vmem_limit_bytes()),
        cost_estimate=pl.CostEstimate(
            flops=2 * M_pad * K_pad * N_pad,
            transcendentals=0,
            bytes_accessed=(M_pad * K_pad + K_pad * N_pad) * in_bytes
            + M_pad * N_pad * out_bytes + N_pad * 4),
    )(patches_p, wt_p, b_p)


def _conv_stats_call(patches_p, wt_p, TM, TN, TK, out_dtype):
    M_pad, K_pad = patches_p.shape
    N_pad = wt_p.shape[1]
    gm, gn, gk = M_pad // TM, N_pad // TN, K_pad // TK
    in_bytes = patches_p.dtype.itemsize
    out_bytes = jnp.dtype(out_dtype).itemsize
    return pl.pallas_call(
        _matmul_stats_kernel,
        grid=(gm, gn, gk),
        in_specs=[pl.BlockSpec((TM, TK), lambda i, j, k: (i, k)),
                  pl.BlockSpec((TK, TN), lambda i, j, k: (k, j))],
        out_specs=(pl.BlockSpec((TM, TN), lambda i, j, k: (i, j)),
                   pl.BlockSpec((1, 1, TN), lambda i, j, k: (i, 0, j)),
                   pl.BlockSpec((1, 1, TN), lambda i, j, k: (i, 0, j))),
        out_shape=(jax.ShapeDtypeStruct((M_pad, N_pad), out_dtype),
                   jax.ShapeDtypeStruct((gm, 1, N_pad), jnp.float32),
                   jax.ShapeDtypeStruct((gm, 1, N_pad), jnp.float32)),
        scratch_shapes=[pltpu.VMEM((TM, TN), jnp.float32)],
        compiler_params=pltpu.CompilerParams(
            dimension_semantics=("parallel", "parallel", "arbitrary"),
            vmem_limit_bytes=_vmem_limit_bytes()),
        cost_estimate=pl.CostEstimate(
            flops=2 * M_pad * K_pad * N_pad + 3 * M_pad * N_pad,
            transcendentals=0,
            bytes_accessed=(M_pad * K_pad + K_pad * N_pad) * in_bytes
            + M_pad * N_pad * out_bytes + 2 * gm * N_pad * 4),
    )(patches_p, wt_p)


def _bn_lrelu_call(y_pad, scale_p, shift_p, TM, TN, out_dtype):
    M_pad, N_pad = y_pad.shape
    gm, gn = M_pad // TM, N_pad // TN
    return pl.pallas_call(
        _bn_lrelu_kernel,
        grid=(gm, gn),
        in_specs=[pl.BlockSpec((TM, TN), lambda i, j: (i, j)),
                  pl.BlockSpec((1, TN), lambda i, j: (0, j)),
                  pl.BlockSpec((1, TN), lambda i, j: (0, j))],
        out_specs=pl.BlockSpec((TM, TN), lambda i, j: (i, j)),
        out_shape=jax.ShapeDtypeStruct((M_pad, N_pad), out_dtype),
        compiler_params=pltpu.CompilerParams(
            dimension_semantics=("parallel", "parallel"),
            vmem_limit_bytes=_vmem_limit_bytes()),
        cost_estimate=pl.CostEstimate(
            flops=3 * M_pad * N_pad,
            transcendentals=0,
            bytes_accessed=M_pad * N_pad * (y_pad.dtype.itemsize
                                            + jnp.dtype(out_dtype).itemsize)
            + 2 * N_pad * 4),
    )(y_pad, scale_p, shift_p)


# ---------------------------------------------------------------------------
# Glue: im2col patch extraction (NHWC), parameter construction, layer driver
# ---------------------------------------------------------------------------
def _im2col(x_nhwc, kh, kw, stride, pad):
    N, H, W, C = x_nhwc.shape
    OH = (H + 2 * pad - kh) // stride + 1
    OW = (W + 2 * pad - kw) // stride + 1
    xp = jnp.pad(x_nhwc, ((0, 0), (pad, pad), (pad, pad), (0, 0)))
    cols = []
    for i in range(kh):
        for j in range(kw):
            cols.append(xp[:, i:i + stride * OH:stride, j:j + stride * OW:stride, :])
    patches = jnp.stack(cols, axis=3)                       # (N, OH, OW, kh*kw, C)
    return patches.reshape(N * OH * OW, kh * kw * C), OH, OW


def build_params(key, input_nc, ndf=64, n_layers=3):
    """Deterministic synthetic parameters mirroring NLayerDiscriminator.__init__ shapes."""
    cfgs = [dict(cin=input_nc, cout=ndf, stride=2, kind="bias_lrelu")]
    nf_mult = 1
    for n in range(1, n_layers):
        nf_mult_prev, nf_mult = nf_mult, min(2 ** n, 8)
        cfgs.append(dict(cin=ndf * nf_mult_prev, cout=ndf * nf_mult, stride=2, kind="bn_lrelu"))
    nf_mult_prev, nf_mult = nf_mult, min(2 ** n_layers, 8)
    cfgs.append(dict(cin=ndf * nf_mult_prev, cout=ndf * nf_mult, stride=1, kind="bn_lrelu"))
    cfgs.append(dict(cin=ndf * nf_mult, cout=1, stride=1, kind="bias"))

    layers = []
    for cfg in cfgs:
        key, kw_, kb_, kg_ = jax.random.split(key, 4)
        cin, cout = cfg["cin"], cfg["cout"]
        w = 0.02 * jax.random.normal(kw_, (cout, cin, KW, KW), jnp.float32)   # OIHW
        # reorder to patch flattening (kh, kw, cin), transpose to (K, Cout)
        wt = w.transpose(0, 2, 3, 1).reshape(cout, KW * KW * cin).T
        layer = dict(kind=cfg["kind"], stride=cfg["stride"], cout=cout, w=w, wt=wt)
        if cfg["kind"] in ("bias_lrelu", "bias"):
            layer["b"] = 0.01 * jax.random.normal(kb_, (1, cout), jnp.float32)
        else:  # BN layers: conv has no bias (use_bias=False with BatchNorm2d)
            layer["gamma"] = 1.0 + 0.1 * jax.random.normal(kg_, (1, cout), jnp.float32)
            layer["beta"] = 0.1 * jax.random.normal(kb_, (1, cout), jnp.float32)
        layers.append(layer)
    return layers


def prepare_params(layers, compute_dtype=jnp.bfloat16):
    """One-time parameter prep: pad / transpose / cast weights outside the forward."""
    prepped = []
    for layer in layers:
        K, Cout = layer["wt"].shape
        p = dict(kind=layer["kind"], stride=layer["stride"], cout=Cout)
        if layer["kind"] == "bias":
            # Final Cout=1 projection handled as a plain XLA matvec (no padding).
            p["wt"] = layer["wt"].astype(compute_dtype)
            p["b"] = layer["b"]
            prepped.append(p)
            continue
        TK = min(TK_CAP, _round_up(K, 128))
        TN = min(TN_CAP, _round_up(Cout, 128))
        K_pad = _round_up(K, TK)
        N_pad = _round_up(Cout, TN)
        p.update(K=K, TK=TK, TN=TN, K_pad=K_pad, N_pad=N_pad)
        p["wt_p"] = jnp.pad(layer["wt"],
                            ((0, K_pad - K), (0, N_pad - Cout))).astype(compute_dtype)
        if layer["kind"] == "bias_lrelu":
            p["b_p"] = jnp.pad(layer["b"], ((0, 0), (0, N_pad - Cout)))
        else:
            p["gamma_p"] = jnp.pad(layer["gamma"], ((0, 0), (0, N_pad - Cout)))
            p["beta_p"] = jnp.pad(layer["beta"], ((0, 0), (0, N_pad - Cout)))
        prepped.append(p)
    return prepped


def discriminator_forward(prepped, x_nchw, compute_dtype=jnp.bfloat16):
    x = jnp.transpose(x_nchw, (0, 2, 3, 1)).astype(compute_dtype)    # NCHW -> NHWC, bf16
    N = x.shape[0]
    for layer in prepped:
        patches, OH, OW = _im2col(x, KW, KW, layer["stride"], PADW)  # bf16 patches
        M, K = patches.shape
        Cout = layer["cout"]

        if layer["kind"] == "bias":
            # Final 1-channel projection: plain XLA matvec (f32 accumulate), keep f32.
            y = jnp.dot(patches, layer["wt"],
                        preferred_element_type=jnp.float32) + layer["b"]
            x = y.reshape(N, OH, OW, Cout)
            continue

        assert K == layer["K"], (K, layer["K"])
        TK, TN = layer["TK"], layer["TN"]
        K_pad, N_pad = layer["K_pad"], layer["N_pad"]
        TM = min(TM_CAP, _round_up(M, 32))
        M_pad = _round_up(M, TM)
        patches_p = jnp.pad(patches, ((0, M_pad - M), (0, K_pad - K)))   # stays bf16

        if layer["kind"] == "bias_lrelu":
            y_pad = _conv_bias_call(patches_p, layer["wt_p"], layer["b_p"],
                                    TM, TN, TK, apply_lrelu=True,
                                    out_dtype=compute_dtype)
        else:  # "bn_lrelu": conv (no bias) + BatchNorm(batch stats) + LeakyReLU
            y_conv, psum, psq = _conv_stats_call(patches_p, layer["wt_p"],
                                                 TM, TN, TK, out_dtype=compute_dtype)
            col_sum = jnp.sum(psum, axis=0)       # (1, N_pad); padded rows are exact zeros
            col_sq = jnp.sum(psq, axis=0)
            mean = col_sum / M
            var = jnp.maximum(col_sq / M - mean * mean, 0.0)   # clamp f32 cancellation
            scale = layer["gamma_p"] * jax.lax.rsqrt(var + BN_EPS)
            shift = layer["beta_p"] - mean * scale
            y_pad = _bn_lrelu_call(y_conv, scale, shift, TM, TN, out_dtype=compute_dtype)

        x = y_pad[:M, :Cout].reshape(N, OH, OW, Cout)
    return jnp.transpose(x, (0, 3, 1, 2)).astype(jnp.float32)           # NHWC -> NCHW


# ---------------------------------------------------------------------------
# Pure-JAX reference (precision-matched: bf16 MXU inputs + bf16 intermediates,
# f32 accumulation / statistics / BN math)
# ---------------------------------------------------------------------------
def _reference_forward(layers, x_nchw, compute_dtype=jnp.bfloat16):
    x = jnp.transpose(x_nchw, (0, 2, 3, 1)).astype(compute_dtype)
    for layer in layers:
        w_hwio = layer["w"].transpose(2, 3, 1, 0).astype(compute_dtype)
        y = jax.lax.conv_general_dilated(
            x.astype(compute_dtype), w_hwio,
            window_strides=(layer["stride"], layer["stride"]),
            padding=[(PADW, PADW), (PADW, PADW)],
            dimension_numbers=("NHWC", "HWIO", "NHWC"),
            preferred_element_type=jnp.float32)
        if layer["kind"] == "bias":
            x = y + layer["b"].reshape(1, 1, 1, -1)
        elif layer["kind"] == "bias_lrelu":
            y = y + layer["b"].reshape(1, 1, 1, -1)
            y = jnp.where(y >= 0, y, LRELU_SLOPE * y)
            x = y.astype(compute_dtype)
        else:  # bn_lrelu (training-mode batch stats, biased variance)
            mean = jnp.mean(y, axis=(0, 1, 2), keepdims=True)
            var = jnp.mean((y - mean) ** 2, axis=(0, 1, 2), keepdims=True)
            scale = layer["gamma"].reshape(1, 1, 1, -1) * jax.lax.rsqrt(var + BN_EPS)
            shift = layer["beta"].reshape(1, 1, 1, -1) - mean * scale
            yb = y.astype(compute_dtype).astype(jnp.float32)   # kernel stores y in bf16
            z = yb * scale + shift
            z = jnp.where(z >= 0, z, LRELU_SLOPE * z)
            x = z.astype(compute_dtype)
    return jnp.transpose(x, (0, 3, 1, 2)).astype(jnp.float32)


if __name__ == "__main__":
    key = jax.random.PRNGKey(0)
    k_param, k_x = jax.random.split(key)

    INPUT_NC, NDF, N_LAYERS = 4, 16, 3
    x = jax.random.normal(k_x, (2, INPUT_NC, 16, 16), jnp.float32)    # NCHW input

    layers = build_params(k_param, INPUT_NC, ndf=NDF, n_layers=N_LAYERS)
    prepped = prepare_params(layers)

    fwd = jax.jit(functools.partial(discriminator_forward, prepped))
    out = jax.block_until_ready(fwd(x))

    ref = jax.block_until_ready(_reference_forward(layers, x))
    assert out.shape == ref.shape == (2, 1, 5, 5), (out.shape, ref.shape)
    max_err = float(jnp.max(jnp.abs(out - ref)))
    assert jnp.allclose(out, ref, atol=5e-3, rtol=5e-3), max_err

    print("KERNEL_OK")
</pallas_src>

<mosaic_0001>
module attributes {stable_mosaic.version = 11 : i64} {
  func.func @_matmul_bias_kernel(%arg0: i32, %arg1: i32, %arg2: i32, %arg3: memref<192x128xbf16, #tpu.memory_space<vmem>>, %arg4: memref<128x128xbf16, #tpu.memory_space<vmem>>, %arg5: memref<1x128xf32, #tpu.memory_space<vmem>>, %arg6: memref<192x128xbf16, #tpu.memory_space<vmem>>, %arg7: memref<192x128xf32, #tpu.memory_space<vmem>>) attributes {dimension_semantics = [#tpu.dimension_semantics<parallel>, #tpu.dimension_semantics<parallel>, #tpu.dimension_semantics<arbitrary>], iteration_bounds = array<i64: 1, 1, 1>, scalar_prefetch = 0 : i64, scratch_operands = 1 : i64, tpu.core_type = #tpu.core_type<tc>, window_params = [{transform_indices = @transform_0, window_bounds = array<i64: 192, 128>}, {transform_indices = @transform_1, window_bounds = array<i64: 128, 128>}, {transform_indices = @transform_2, window_bounds = array<i64: 1, 128>}, {transform_indices = @transform_3, window_bounds = array<i64: 192, 128>}]} {
    %c0_i32 = arith.constant 0 : i32
    %0 = arith.cmpi eq, %arg2, %c0_i32 : i32
    %1 = arith.extui %0 : i1 to i32
    %c0_i32_0 = arith.constant 0 : i32
    %2 = arith.cmpi ne, %1, %c0_i32_0 : i32
    scf.if %2 {
      %cst_10 = arith.constant 0.000000e+00 : f32
      %12 = vector.broadcast %cst_10 : f32 to vector<192x128xf32>
      %c0_11 = arith.constant 0 : index
      %c0_12 = arith.constant 0 : index
      %13 = vector.load %arg7[%c0_11, %c0_12] : memref<192x128xf32, #tpu.memory_space<vmem>>, vector<192x128xf32>
      tpu.vector_store %arg7[%c0_11, %c0_12], %12 {strides = array<i32>} : memref<192x128xf32, #tpu.memory_space<vmem>>, vector<192x128xf32>,
    } else {
    }
    %c0 = arith.constant 0 : index
    %c0_1 = arith.constant 0 : index
    %3 = vector.load %arg7[%c0, %c0_1] : memref<192x128xf32, #tpu.memory_space<vmem>>, vector<192x128xf32>
    %c0_2 = arith.constant 0 : index
    %c0_3 = arith.constant 0 : index
    %4 = vector.load %arg3[%c0_2, %c0_3] : memref<192x128xbf16, #tpu.memory_space<vmem>>, vector<192x128xbf16>
    %c0_4 = arith.constant 0 : index
    %c0_5 = arith.constant 0 : index
    %5 = vector.load %arg4[%c0_4, %c0_5] : memref<128x128xbf16, #tpu.memory_space<vmem>>, vector<128x128xbf16>
    %cst = arith.constant dense<0.000000e+00> : vector<192x128xf32>
    %6 = tpu.matmul %4, %5, %cst {dimension_numbers = #tpu.dot_dimension_numbers<[1], [0], [0], [1], [0, 0, 1, 1], [], []>} : vector<192x128xbf16>, vector<128x128xbf16>, vector<192x128xf32> -> vector<192x128xf32>
    %7 = arith.addf %3, %6 : vector<192x128xf32>
    %c0_6 = arith.constant 0 : index
    %c0_7 = arith.constant 0 : index
    %8 = vector.load %arg7[%c0_6, %c0_7] : memref<192x128xf32, #tpu.memory_space<vmem>>, vector<192x128xf32>
    tpu.vector_store %arg7[%c0_6, %c0_7], %7 {strides = array<i32>} : memref<192x128xf32, #tpu.memory_space<vmem>>, vector<192x128xf32>,
    %c0_i32_8 = arith.constant 0 : i32
    %9 = arith.cmpi eq, %arg2, %c0_i32_8 : i32
    %10 = arith.extui %9 : i1 to i32
    %c0_i32_9 = arith.constant 0 : i32
    %11 = arith.cmpi ne, %10, %c0_i32_9 : i32
    scf.if %11 {
      %c0_10 = arith.constant 0 : index
      %c0_11 = arith.constant 0 : index
      %12 = vector.load %arg7[%c0_10, %c0_11] : memref<192x128xf32, #tpu.memory_space<vmem>>, vector<192x128xf32>
      %c0_12 = arith.constant 0 : index
      %c0_13 = arith.constant 0 : index
      %13 = vector.load %arg5[%c0_12, %c0_13] : memref<1x128xf32, #tpu.memory_space<vmem>>, vector<1x128xf32>
      %14 = vector.broadcast %13 : vector<1x128xf32> to vector<192x128xf32>
      %15 = arith.addf %12, %14 : vector<192x128xf32>
      %cst_14 = arith.constant 2.000000e-01 : f32
      %16 = vector.broadcast %cst_14 : f32 to vector<192x128xf32>
      %17 = arith.mulf %16, %15 : vector<192x128xf32>
      %18 = arith.maximumf %15, %17 : vector<192x128xf32>
      %19 = arith.truncf %18 : vector<192x128xf32> to vector<192x128xbf16>
      %c0_15 = arith.constant 0 : index
      %c0_16 = arith.constant 0 : index
      %20 = vector.load %arg6[%c0_15, %c0_16] : memref<192x128xbf16, #tpu.memory_space<vmem>>, vector<192x128xbf16>
      tpu.vector_store %arg6[%c0_15, %c0_16], %19 {strides = array<i32>} : memref<192x128xbf16, #tpu.memory_space<vmem>>, vector<192x128xbf16>,
    } else {
    }
    return
  }
  func.func @transform_0(%arg0: i32, %arg1: i32, %arg2: i32) -> (i32, i32) {
    %c0_i32 = arith.constant 0 : i32
    return %arg0, %arg2 : i32, i32
  }
  func.func @transform_1(%arg0: i32, %arg1: i32, %arg2: i32) -> (i32, i32) {
    %c0_i32 = arith.constant 0 : i32
    return %arg2, %arg1 : i32, i32
  }
  func.func @transform_2(%arg0: i32, %arg1: i32, %arg2: i32) -> (i32, i32) {
    %c0_i32 = arith.constant 0 : i32
    %c0_i32_0 = arith.constant 0 : i32
    return %c0_i32, %arg1 : i32, i32
  }
  func.func @transform_3(%arg0: i32, %arg1: i32, %arg2: i32) -> (i32, i32) {
    %c0_i32 = arith.constant 0 : i32
    return %arg0, %arg1 : i32, i32
  }
}

module attributes {stable_mosaic.version = 11 : i64} {
  func.func @_matmul_stats_kernel(%arg0: i32, %arg1: i32, %arg2: i32, %arg3: memref<64x256xbf16, #tpu.memory_space<vmem>>, %arg4: memref<256x128xbf16, #tpu.memory_space<vmem>>, %arg5: memref<64x128xbf16, #tpu.memory_space<vmem>>, %arg6: memref<1x1x128xf32, #tpu.memory_space<vmem>>, %arg7: memref<1x1x128xf32, #tpu.memory_space<vmem>>, %arg8: memref<64x128xf32, #tpu.memory_space<vmem>>) attributes {dimension_semantics = [#tpu.dimension_semantics<parallel>, #tpu.dimension_semantics<parallel>, #tpu.dimension_semantics<arbitrary>], iteration_bounds = array<i64: 1, 1, 1>, scalar_prefetch = 0 : i64, scratch_operands = 1 : i64, tpu.core_type = #tpu.core_type<tc>, window_params = [{transform_indices = @transform_0, window_bounds = array<i64: 64, 256>}, {transform_indices = @transform_1, window_bounds = array<i64: 256, 128>}, {transform_indices = @transform_2, window_bounds = array<i64: 64, 128>}, {transform_indices = @transform_3, window_bounds = array<i64: 1, 1, 128>}, {transform_indices = @transform_4, window_bounds = array<i64: 1, 1, 128>}]} {
    %c0_i32 = arith.constant 0 : i32
    %0 = arith.cmpi eq, %arg2, %c0_i32 : i32
    %1 = arith.extui %0 : i1 to i32
    %c0_i32_0 = arith.constant 0 : i32
    %2 = arith.cmpi ne, %1, %c0_i32_0 : i32
    scf.if %2 {
      %cst_10 = arith.constant 0.000000e+00 : f32
      %12 = vector.broadcast %cst_10 : f32 to vector<64x128xf32>
      %c0_11 = arith.constant 0 : index
      %c0_12 = arith.constant 0 : index
      %13 = vector.load %arg8[%c0_11, %c0_12] : memref<64x128xf32, #tpu.memory_space<vmem>>, vector<64x128xf32>
      tpu.vector_store %arg8[%c0_11, %c0_12], %12 {strides = array<i32>} : memref<64x128xf32, #tpu.memory_space<vmem>>, vector<64x128xf32>,
    } else {
    }
    %c0 = arith.constant 0 : index
    %c0_1 = arith.constant 0 : index
    %3 = vector.load %arg8[%c0, %c0_1] : memref<64x128xf32, #tpu.memory_space<vmem>>, vector<64x128xf32>
    %c0_2 = arith.constant 0 : index
    %c0_3 = arith.constant 0 : index
    %4 = vector.load %arg3[%c0_2, %c0_3] : memref<64x256xbf16, #tpu.memory_space<vmem>>, vector<64x256xbf16>
    %c0_4 = arith.constant 0 : index
    %c0_5 = arith.constant 0 : index
    %5 = vector.load %arg4[%c0_4, %c0_5] : memref<256x128xbf16, #tpu.memory_space<vmem>>, vector<256x128xbf16>
    %cst = arith.constant dense<0.000000e+00> : vector<64x128xf32>
    %6 = tpu.matmul %4, %5, %cst {dimension_numbers = #tpu.dot_dimension_numbers<[1], [0], [0], [1], [0, 0, 1, 1], [], []>} : vector<64x256xbf16>, vector<256x128xbf16>, vector<64x128xf32> -> vector<64x128xf32>
    %7 = arith.addf %3, %6 : vector<64x128xf32>
    %c0_6 = arith.constant 0 : index
    %c0_7 = arith.constant 0 : index
    %8 = vector.load %arg8[%c0_6, %c0_7] : memref<64x128xf32, #tpu.memory_space<vmem>>, vector<64x128xf32>
    tpu.vector_store %arg8[%c0_6, %c0_7], %7 {strides = array<i32>} : memref<64x128xf32, #tpu.memory_space<vmem>>, vector<64x128xf32>,
    %c0_i32_8 = arith.constant 0 : i32
    %9 = arith.cmpi eq, %arg2, %c0_i32_8 : i32
    %10 = arith.extui %9 : i1 to i32
    %c0_i32_9 = arith.constant 0 : i32
    %11 = arith.cmpi ne, %10, %c0_i32_9 : i32
    scf.if %11 {
      %c0_10 = arith.constant 0 : index
      %c0_11 = arith.constant 0 : index
      %12 = vector.load %arg8[%c0_10, %c0_11] : memref<64x128xf32, #tpu.memory_space<vmem>>, vector<64x128xf32>
      %13 = arith.truncf %12 : vector<64x128xf32> to vector<64x128xbf16>
      %c0_12 = arith.constant 0 : index
      %c0_13 = arith.constant 0 : index
      %14 = vector.load %arg5[%c0_12, %c0_13] : memref<64x128xbf16, #tpu.memory_space<vmem>>, vector<64x128xbf16>
      tpu.vector_store %arg5[%c0_12, %c0_13], %13 {strides = array<i32>} : memref<64x128xbf16, #tpu.memory_space<vmem>>, vector<64x128xbf16>,
      %cst_14 = arith.constant dense<0.000000e+00> : vector<128xf32>
      %15 = vector.multi_reduction <add>, %12, %cst_14 [0] : vector<64x128xf32> to vector<128xf32>
      %16 = vector.shape_cast %15 : vector<128xf32> to vector<1x128xf32>
      %17 = vector.shape_cast %16 : vector<1x128xf32> to vector<1x1x128xf32>
      %c0_15 = arith.constant 0 : index
      %c0_16 = arith.constant 0 : index
      %c0_17 = arith.constant 0 : index
      %18 = vector.load %arg6[%c0_15, %c0_16, %c0_17] : memref<1x1x128xf32, #tpu.memory_space<vmem>>, vector<1x1x128xf32>
      tpu.vector_store %arg6[%c0_15, %c0_16, %c0_17], %17 {strides = array<i32>} : memref<1x1x128xf32, #tpu.memory_space<vmem>>, vector<1x1x128xf32>,
      %19 = arith.mulf %12, %12 : vector<64x128xf32>
      %cst_18 = arith.constant dense<0.000000e+00> : vector<128xf32>
      %20 = vector.multi_reduction <add>, %19, %cst_18 [0] : vector<64x128xf32> to vector<128xf32>
      %21 = vector.shape_cast %20 : vector<128xf32> to vector<1x128xf32>
      %22 = vector.shape_cast %21 : vector<1x128xf32> to vector<1x1x128xf32>
      %c0_19 = arith.constant 0 : index
      %c0_20 = arith.constant 0 : index
      %c0_21 = arith.constant 0 : index
      %23 = vector.load %arg7[%c0_19, %c0_20, %c0_21] : memref<1x1x128xf32, #tpu.memory_space<vmem>>, vector<1x1x128xf32>
      tpu.vector_store %arg7[%c0_19, %c0_20, %c0_21], %22 {strides = array<i32>} : memref<1x1x128xf32, #tpu.memory_space<vmem>>, vector<1x1x128xf32>,
    } else {
    }
    return
  }
  func.func @transform_0(%arg0: i32, %arg1: i32, %arg2: i32) -> (i32, i32) {
    %c0_i32 = arith.constant 0 : i32
    return %arg0, %arg2 : i32, i32
  }
  func.func @transform_1(%arg0: i32, %arg1: i32, %arg2: i32) -> (i32, i32) {
    %c0_i32 = arith.constant 0 : i32
    return %arg2, %arg1 : i32, i32
  }
  func.func @transform_2(%arg0: i32, %arg1: i32, %arg2: i32) -> (i32, i32) {
    %c0_i32 = arith.constant 0 : i32
    return %arg0, %arg1 : i32, i32
  }
  func.func @transform_3(%arg0: i32, %arg1: i32, %arg2: i32) -> (i32, i32, i32) {
    %c0_i32 = arith.constant 0 : i32
    %c0_i32_0 = arith.constant 0 : i32
    return %arg0, %c0_i32, %arg1 : i32, i32, i32
  }
  func.func @transform_4(%arg0: i32, %arg1: i32, %arg2: i32) -> (i32, i32, i32) {
    %c0_i32 = arith.constant 0 : i32
    %c0_i32_0 = arith.constant 0 : i32
    return %arg0, %c0_i32, %arg1 : i32, i32, i32
  }
}

module attributes {stable_mosaic.version = 11 : i64} {
  func.func @_bn_lrelu_kernel(%arg0: i32, %arg1: i32, %arg2: memref<64x128xbf16, #tpu.memory_space<vmem>>, %arg3: memref<1x128xf32, #tpu.memory_space<vmem>>, %arg4: memref<1x128xf32, #tpu.memory_space<vmem>>, %arg5: memref<64x128xbf16, #tpu.memory_space<vmem>>) attributes {dimension_semantics = [#tpu.dimension_semantics<parallel>, #tpu.dimension_semantics<parallel>], iteration_bounds = array<i64: 1, 1>, scalar_prefetch = 0 : i64, scratch_operands = 0 : i64, tpu.core_type = #tpu.core_type<tc>, window_params = [{transform_indices = @transform_0, window_bounds = array<i64: 64, 128>}, {transform_indices = @transform_1, window_bounds = array<i64: 1, 128>}, {transform_indices = @transform_2, window_bounds = array<i64: 1, 128>}, {transform_indices = @transform_3, window_bounds = array<i64: 64, 128>}]} {
    %c0 = arith.constant 0 : index
    %c0_0 = arith.constant 0 : index
    %0 = vector.load %arg2[%c0, %c0_0] : memref<64x128xbf16, #tpu.memory_space<vmem>>, vector<64x128xbf16>
    %1 = arith.extf %0 : vector<64x128xbf16> to vector<64x128xf32>
    %c0_1 = arith.constant 0 : index
    %c0_2 = arith.constant 0 : index
    %2 = vector.load %arg3[%c0_1, %c0_2] : memref<1x128xf32, #tpu.memory_space<vmem>>, vector<1x128xf32>
    %3 = vector.broadcast %2 : vector<1x128xf32> to vector<64x128xf32>
    %4 = arith.mulf %1, %3 : vector<64x128xf32>
    %c0_3 = arith.constant 0 : index
    %c0_4 = arith.constant 0 : index
    %5 = vector.load %arg4[%c0_3, %c0_4] : memref<1x128xf32, #tpu.memory_space<vmem>>, vector<1x128xf32>
    %6 = vector.broadcast %5 : vector<1x128xf32> to vector<64x128xf32>
    %7 = arith.addf %4, %6 : vector<64x128xf32>
    %cst = arith.constant 2.000000e-01 : f32
    %8 = vector.broadcast %cst : f32 to vector<64x128xf32>
    %9 = arith.mulf %8, %7 : vector<64x128xf32>
    %10 = arith.maximumf %7, %9 : vector<64x128xf32>
    %11 = arith.truncf %10 : vector<64x128xf32> to vector<64x128xbf16>
    %c0_5 = arith.constant 0 : index
    %c0_6 = arith.constant 0 : index
    %12 = vector.load %arg5[%c0_5, %c0_6] : memref<64x128xbf16, #tpu.memory_space<vmem>>, vector<64x128xbf16>
    tpu.vector_store %arg5[%c0_5, %c0_6], %11 {strides = array<i32>} : memref<64x128xbf16, #tpu.memory_space<vmem>>, vector<64x128xbf16>,
    return
  }
  func.func @transform_0(%arg0: i32, %arg1: i32) -> (i32, i32) {
    %c0_i32 = arith.constant 0 : i32
    return %arg0, %arg1 : i32, i32
  }
  func.func @transform_1(%arg0: i32, %arg1: i32) -> (i32, i32) {
    %c0_i32 = arith.constant 0 : i32
    %c0_i32_0 = arith.constant 0 : i32
    return %c0_i32, %arg1 : i32, i32
  }
  func.func @transform_2(%arg0: i32, %arg1: i32) -> (i32, i32) {
    %c0_i32 = arith.constant 0 : i32
    %c0_i32_0 = arith.constant 0 : i32
    return %c0_i32, %arg1 : i32, i32
  }
  func.func @transform_3(%arg0: i32, %arg1: i32) -> (i32, i32) {
    %c0_i32 = arith.constant 0 : i32
    return %arg0, %arg1 : i32, i32
  }
}

module attributes {stable_mosaic.version = 11 : i64} {
  func.func @_bn_lrelu_kernel(%arg0: i32, %arg1: i32, %arg2: memref<32x128xbf16, #tpu.memory_space<vmem>>, %arg3: memref<1x128xf32, #tpu.memory_space<vmem>>, %arg4: memref<1x128xf32, #tpu.memory_space<vmem>>, %arg5: memref<32x128xbf16, #tpu.memory_space<vmem>>) attributes {dimension_semantics = [#tpu.dimension_semantics<parallel>, #tpu.dimension_semantics<parallel>], iteration_bounds = array<i64: 1, 1>, scalar_prefetch = 0 : i64, scratch_operands = 0 : i64, tpu.core_type = #tpu.core_type<tc>, window_params = [{transform_indices = @transform_0, window_bounds = array<i64: 32, 128>}, {transform_indices = @transform_1, window_bounds = array<i64: 1, 128>}, {transform_indices = @transform_2, window_bounds = array<i64: 1, 128>}, {transform_indices = @transform_3, window_bounds = array<i64: 32, 128>}]} {
    %c0 = arith.constant 0 : index
    %c0_0 = arith.constant 0 : index
    %0 = vector.load %arg2[%c0, %c0_0] : memref<32x128xbf16, #tpu.memory_space<vmem>>, vector<32x128xbf16>
    %1 = arith.extf %0 : vector<32x128xbf16> to vector<32x128xf32>
    %c0_1 = arith.constant 0 : index
    %c0_2 = arith.constant 0 : index
    %2 = vector.load %arg3[%c0_1, %c0_2] : memref<1x128xf32, #tpu.memory_space<vmem>>, vector<1x128xf32>
    %3 = vector.broadcast %2 : vector<1x128xf32> to vector<32x128xf32>
    %4 = arith.mulf %1, %3 : vector<32x128xf32>
    %c0_3 = arith.constant 0 : index
    %c0_4 = arith.constant 0 : index
    %5 = vector.load %arg4[%c0_3, %c0_4] : memref<1x128xf32, #tpu.memory_space<vmem>>, vector<1x128xf32>
    %6 = vector.broadcast %5 : vector<1x128xf32> to vector<32x128xf32>
    %7 = arith.addf %4, %6 : vector<32x128xf32>
    %cst = arith.constant 2.000000e-01 : f32
    %8 = vector.broadcast %cst : f32 to vector<32x128xf32>
    %9 = arith.mulf %8, %7 : vector<32x128xf32>
    %10 = arith.maximumf %7, %9 : vector<32x128xf32>
    %11 = arith.truncf %10 : vector<32x128xf32> to vector<32x128xbf16>
    %c0_5 = arith.constant 0 : index
    %c0_6 = arith.constant 0 : index
    %12 = vector.load %arg5[%c0_5, %c0_6] : memref<32x128xbf16, #tpu.memory_space<vmem>>, vector<32x128xbf16>
    tpu.vector_store %arg5[%c0_5, %c0_6], %11 {strides = array<i32>} : memref<32x128xbf16, #tpu.memory_space<vmem>>, vector<32x128xbf16>,
    return
  }
  func.func @transform_0(%arg0: i32, %arg1: i32) -> (i32, i32) {
    %c0_i32 = arith.constant 0 : i32
    return %arg0, %arg1 : i32, i32
  }
  func.func @transform_1(%arg0: i32, %arg1: i32) -> (i32, i32) {
    %c0_i32 = arith.constant 0 : i32
    %c0_i32_0 = arith.constant 0 : i32
    return %c0_i32, %arg1 : i32, i32
  }
  func.func @transform_2(%arg0: i32, %arg1: i32) -> (i32, i32) {
    %c0_i32 = arith.constant 0 : i32
    %c0_i32_0 = arith.constant 0 : i32
    return %c0_i32, %arg1 : i32, i32
  }
  func.func @transform_3(%arg0: i32, %arg1: i32) -> (i32, i32) {
    %c0_i32 = arith.constant 0 : i32
    return %arg0, %arg1 : i32, i32
  }
}

module attributes {stable_mosaic.version = 11 : i64} {
  func.func @_matmul_stats_kernel(%arg0: i32, %arg1: i32, %arg2: i32, %arg3: memref<32x512xbf16, #tpu.memory_space<vmem>>, %arg4: memref<512x128xbf16, #tpu.memory_space<vmem>>, %arg5: memref<32x128xbf16, #tpu.memory_space<vmem>>, %arg6: memref<1x1x128xf32, #tpu.memory_space<vmem>>, %arg7: memref<1x1x128xf32, #tpu.memory_space<vmem>>, %arg8: memref<32x128xf32, #tpu.memory_space<vmem>>) attributes {dimension_semantics = [#tpu.dimension_semantics<parallel>, #tpu.dimension_semantics<parallel>, #tpu.dimension_semantics<arbitrary>], iteration_bounds = array<i64: 1, 1, 1>, scalar_prefetch = 0 : i64, scratch_operands = 1 : i64, tpu.core_type = #tpu.core_type<tc>, window_params = [{transform_indices = @transform_0, window_bounds = array<i64: 32, 512>}, {transform_indices = @transform_1, window_bounds = array<i64: 512, 128>}, {transform_indices = @transform_2, window_bounds = array<i64: 32, 128>}, {transform_indices = @transform_3, window_bounds = array<i64: 1, 1, 128>}, {transform_indices = @transform_4, window_bounds = array<i64: 1, 1, 128>}]} {
    %c0_i32 = arith.constant 0 : i32
    %0 = arith.cmpi eq, %arg2, %c0_i32 : i32
    %1 = arith.extui %0 : i1 to i32
    %c0_i32_0 = arith.constant 0 : i32
    %2 = arith.cmpi ne, %1, %c0_i32_0 : i32
    scf.if %2 {
      %cst_10 = arith.constant 0.000000e+00 : f32
      %12 = vector.broadcast %cst_10 : f32 to vector<32x128xf32>
      %c0_11 = arith.constant 0 : index
      %c0_12 = arith.constant 0 : index
      %13 = vector.load %arg8[%c0_11, %c0_12] : memref<32x128xf32, #tpu.memory_space<vmem>>, vector<32x128xf32>
      tpu.vector_store %arg8[%c0_11, %c0_12], %12 {strides = array<i32>} : memref<32x128xf32, #tpu.memory_space<vmem>>, vector<32x128xf32>,
    } else {
    }
    %c0 = arith.constant 0 : index
    %c0_1 = arith.constant 0 : index
    %3 = vector.load %arg8[%c0, %c0_1] : memref<32x128xf32, #tpu.memory_space<vmem>>, vector<32x128xf32>
    %c0_2 = arith.constant 0 : index
    %c0_3 = arith.constant 0 : index
    %4 = vector.load %arg3[%c0_2, %c0_3] : memref<32x512xbf16, #tpu.memory_space<vmem>>, vector<32x512xbf16>
    %c0_4 = arith.constant 0 : index
    %c0_5 = arith.constant 0 : index
    %5 = vector.load %arg4[%c0_4, %c0_5] : memref<512x128xbf16, #tpu.memory_space<vmem>>, vector<512x128xbf16>
    %cst = arith.constant dense<0.000000e+00> : vector<32x128xf32>
    %6 = tpu.matmul %4, %5, %cst {dimension_numbers = #tpu.dot_dimension_numbers<[1], [0], [0], [1], [0, 0, 1, 1], [], []>} : vector<32x512xbf16>, vector<512x128xbf16>, vector<32x128xf32> -> vector<32x128xf32>
    %7 = arith.addf %3, %6 : vector<32x128xf32>
    %c0_6 = arith.constant 0 : index
    %c0_7 = arith.constant 0 : index
    %8 = vector.load %arg8[%c0_6, %c0_7] : memref<32x128xf32, #tpu.memory_space<vmem>>, vector<32x128xf32>
    tpu.vector_store %arg8[%c0_6, %c0_7], %7 {strides = array<i32>} : memref<32x128xf32, #tpu.memory_space<vmem>>, vector<32x128xf32>,
    %c0_i32_8 = arith.constant 0 : i32
    %9 = arith.cmpi eq, %arg2, %c0_i32_8 : i32
    %10 = arith.extui %9 : i1 to i32
    %c0_i32_9 = arith.constant 0 : i32
    %11 = arith.cmpi ne, %10, %c0_i32_9 : i32
    scf.if %11 {
      %c0_10 = arith.constant 0 : index
      %c0_11 = arith.constant 0 : index
      %12 = vector.load %arg8[%c0_10, %c0_11] : memref<32x128xf32, #tpu.memory_space<vmem>>, vector<32x128xf32>
      %13 = arith.truncf %12 : vector<32x128xf32> to vector<32x128xbf16>
      %c0_12 = arith.constant 0 : index
      %c0_13 = arith.constant 0 : index
      %14 = vector.load %arg5[%c0_12, %c0_13] : memref<32x128xbf16, #tpu.memory_space<vmem>>, vector<32x128xbf16>
      tpu.vector_store %arg5[%c0_12, %c0_13], %13 {strides = array<i32>} : memref<32x128xbf16, #tpu.memory_space<vmem>>, vector<32x128xbf16>,
      %cst_14 = arith.constant dense<0.000000e+00> : vector<128xf32>
      %15 = vector.multi_reduction <add>, %12, %cst_14 [0] : vector<32x128xf32> to vector<128xf32>
      %16 = vector.shape_cast %15 : vector<128xf32> to vector<1x128xf32>
      %17 = vector.shape_cast %16 : vector<1x128xf32> to vector<1x1x128xf32>
      %c0_15 = arith.constant 0 : index
      %c0_16 = arith.constant 0 : index
      %c0_17 = arith.constant 0 : index
      %18 = vector.load %arg6[%c0_15, %c0_16, %c0_17] : memref<1x1x128xf32, #tpu.memory_space<vmem>>, vector<1x1x128xf32>
      tpu.vector_store %arg6[%c0_15, %c0_16, %c0_17], %17 {strides = array<i32>} : memref<1x1x128xf32, #tpu.memory_space<vmem>>, vector<1x1x128xf32>,
      %19 = arith.mulf %12, %12 : vector<32x128xf32>
      %cst_18 = arith.constant dense<0.000000e+00> : vector<128xf32>
      %20 = vector.multi_reduction <add>, %19, %cst_18 [0] : vector<32x128xf32> to vector<128xf32>
      %21 = vector.shape_cast %20 : vector<128xf32> to vector<1x128xf32>
      %22 = vector.shape_cast %21 : vector<1x128xf32> to vector<1x1x128xf32>
      %c0_19 = arith.constant 0 : index
      %c0_20 = arith.constant 0 : index
      %c0_21 = arith.constant 0 : index
      %23 = vector.load %arg7[%c0_19, %c0_20, %c0_21] : memref<1x1x128xf32, #tpu.memory_space<vmem>>, vector<1x1x128xf32>
      tpu.vector_store %arg7[%c0_19, %c0_20, %c0_21], %22 {strides = array<i32>} : memref<1x1x128xf32, #tpu.memory_space<vmem>>, vector<1x1x128xf32>,
    } else {
    }
    return
  }
  func.func @transform_0(%arg0: i32, %arg1: i32, %arg2: i32) -> (i32, i32) {
    %c0_i32 = arith.constant 0 : i32
    return %arg0, %arg2 : i32, i32
  }
  func.func @transform_1(%arg0: i32, %arg1: i32, %arg2: i32) -> (i32, i32) {
    %c0_i32 = arith.constant 0 : i32
    return %arg2, %arg1 : i32, i32
  }
  func.func @transform_2(%arg0: i32, %arg1: i32, %arg2: i32) -> (i32, i32) {
    %c0_i32 = arith.constant 0 : i32
    return %arg0, %arg1 : i32, i32
  }
  func.func @transform_3(%arg0: i32, %arg1: i32, %arg2: i32) -> (i32, i32, i32) {
    %c0_i32 = arith.constant 0 : i32
    %c0_i32_0 = arith.constant 0 : i32
    return %arg0, %c0_i32, %arg1 : i32, i32, i32
  }
  func.func @transform_4(%arg0: i32, %arg1: i32, %arg2: i32) -> (i32, i32, i32) {
    %c0_i32 = arith.constant 0 : i32
    %c0_i32_0 = arith.constant 0 : i32
    return %arg0, %c0_i32, %arg1 : i32, i32, i32
  }
}

module attributes {stable_mosaic.version = 11 : i64} {
  func.func @_matmul_stats_kernel(%arg0: i32, %arg1: i32, %arg2: i32, %arg3: memref<32x1024xbf16, #tpu.memory_space<vmem>>, %arg4: memref<1024x128xbf16, #tpu.memory_space<vmem>>, %arg5: memref<32x128xbf16, #tpu.memory_space<vmem>>, %arg6: memref<1x1x128xf32, #tpu.memory_space<vmem>>, %arg7: memref<1x1x128xf32, #tpu.memory_space<vmem>>, %arg8: memref<32x128xf32, #tpu.memory_space<vmem>>) attributes {dimension_semantics = [#tpu.dimension_semantics<parallel>, #tpu.dimension_semantics<parallel>, #tpu.dimension_semantics<arbitrary>], iteration_bounds = array<i64: 1, 1, 1>, scalar_prefetch = 0 : i64, scratch_operands = 1 : i64, tpu.core_type = #tpu.core_type<tc>, window_params = [{transform_indices = @transform_0, window_bounds = array<i64: 32, 1024>}, {transform_indices = @transform_1, window_bounds = array<i64: 1024, 128>}, {transform_indices = @transform_2, window_bounds = array<i64: 32, 128>}, {transform_indices = @transform_3, window_bounds = array<i64: 1, 1, 128>}, {transform_indices = @transform_4, window_bounds = array<i64: 1, 1, 128>}]} {
    %c0_i32 = arith.constant 0 : i32
    %0 = arith.cmpi eq, %arg2, %c0_i32 : i32
    %1 = arith.extui %0 : i1 to i32
    %c0_i32_0 = arith.constant 0 : i32
    %2 = arith.cmpi ne, %1, %c0_i32_0 : i32
    scf.if %2 {
      %cst_10 = arith.constant 0.000000e+00 : f32
      %12 = vector.broadcast %cst_10 : f32 to vector<32x128xf32>
      %c0_11 = arith.constant 0 : index
      %c0_12 = arith.constant 0 : index
      %13 = vector.load %arg8[%c0_11, %c0_12] : memref<32x128xf32, #tpu.memory_space<vmem>>, vector<32x128xf32>
      tpu.vector_store %arg8[%c0_11, %c0_12], %12 {strides = array<i32>} : memref<32x128xf32, #tpu.memory_space<vmem>>, vector<32x128xf32>,
    } else {
    }
    %c0 = arith.constant 0 : index
    %c0_1 = arith.constant 0 : index
    %3 = vector.load %arg8[%c0, %c0_1] : memref<32x128xf32, #tpu.memory_space<vmem>>, vector<32x128xf32>
    %c0_2 = arith.constant 0 : index
    %c0_3 = arith.constant 0 : index
    %4 = vector.load %arg3[%c0_2, %c0_3] : memref<32x1024xbf16, #tpu.memory_space<vmem>>, vector<32x1024xbf16>
    %c0_4 = arith.constant 0 : index
    %c0_5 = arith.constant 0 : index
    %5 = vector.load %arg4[%c0_4, %c0_5] : memref<1024x128xbf16, #tpu.memory_space<vmem>>, vector<1024x128xbf16>
    %cst = arith.constant dense<0.000000e+00> : vector<32x128xf32>
    %6 = tpu.matmul %4, %5, %cst {dimension_numbers = #tpu.dot_dimension_numbers<[1], [0], [0], [1], [0, 0, 1, 1], [], []>} : vector<32x1024xbf16>, vector<1024x128xbf16>, vector<32x128xf32> -> vector<32x128xf32>
    %7 = arith.addf %3, %6 : vector<32x128xf32>
    %c0_6 = arith.constant 0 : index
    %c0_7 = arith.constant 0 : index
    %8 = vector.load %arg8[%c0_6, %c0_7] : memref<32x128xf32, #tpu.memory_space<vmem>>, vector<32x128xf32>
    tpu.vector_store %arg8[%c0_6, %c0_7], %7 {strides = array<i32>} : memref<32x128xf32, #tpu.memory_space<vmem>>, vector<32x128xf32>,
    %c0_i32_8 = arith.constant 0 : i32
    %9 = arith.cmpi eq, %arg2, %c0_i32_8 : i32
    %10 = arith.extui %9 : i1 to i32
    %c0_i32_9 = arith.constant 0 : i32
    %11 = arith.cmpi ne, %10, %c0_i32_9 : i32
    scf.if %11 {
      %c0_10 = arith.constant 0 : index
      %c0_11 = arith.constant 0 : index
      %12 = vector.load %arg8[%c0_10, %c0_11] : memref<32x128xf32, #tpu.memory_space<vmem>>, vector<32x128xf32>
      %13 = arith.truncf %12 : vector<32x128xf32> to vector<32x128xbf16>
      %c0_12 = arith.constant 0 : index
      %c0_13 = arith.constant 0 : index
      %14 = vector.load %arg5[%c0_12, %c0_13] : memref<32x128xbf16, #tpu.memory_space<vmem>>, vector<32x128xbf16>
      tpu.vector_store %arg5[%c0_12, %c0_13], %13 {strides = array<i32>} : memref<32x128xbf16, #tpu.memory_space<vmem>>, vector<32x128xbf16>,
      %cst_14 = arith.constant dense<0.000000e+00> : vector<128xf32>
      %15 = vector.multi_reduction <add>, %12, %cst_14 [0] : vector<32x128xf32> to vector<128xf32>
      %16 = vector.shape_cast %15 : vector<128xf32> to vector<1x128xf32>
      %17 = vector.shape_cast %16 : vector<1x128xf32> to vector<1x1x128xf32>
      %c0_15 = arith.constant 0 : index
      %c0_16 = arith.constant 0 : index
      %c0_17 = arith.constant 0 : index
      %18 = vector.load %arg6[%c0_15, %c0_16, %c0_17] : memref<1x1x128xf32, #tpu.memory_space<vmem>>, vector<1x1x128xf32>
      tpu.vector_store %arg6[%c0_15, %c0_16, %c0_17], %17 {strides = array<i32>} : memref<1x1x128xf32, #tpu.memory_space<vmem>>, vector<1x1x128xf32>,
      %19 = arith.mulf %12, %12 : vector<32x128xf32>
      %cst_18 = arith.constant dense<0.000000e+00> : vector<128xf32>
      %20 = vector.multi_reduction <add>, %19, %cst_18 [0] : vector<32x128xf32> to vector<128xf32>
      %21 = vector.shape_cast %20 : vector<128xf32> to vector<1x128xf32>
      %22 = vector.shape_cast %21 : vector<1x128xf32> to vector<1x1x128xf32>
      %c0_19 = arith.constant 0 : index
      %c0_20 = arith.constant 0 : index
      %c0_21 = arith.constant 0 : index
      %23 = vector.load %arg7[%c0_19, %c0_20, %c0_21] : memref<1x1x128xf32, #tpu.memory_space<vmem>>, vector<1x1x128xf32>
      tpu.vector_store %arg7[%c0_19, %c0_20, %c0_21], %22 {strides = array<i32>} : memref<1x1x128xf32, #tpu.memory_space<vmem>>, vector<1x1x128xf32>,
    } else {
    }
    return
  }
  func.func @transform_0(%arg0: i32, %arg1: i32, %arg2: i32) -> (i32, i32) {
    %c0_i32 = arith.constant 0 : i32
    return %arg0, %arg2 : i32, i32
  }
  func.func @transform_1(%arg0: i32, %arg1: i32, %arg2: i32) -> (i32, i32) {
    %c0_i32 = arith.constant 0 : i32
    return %arg2, %arg1 : i32, i32
  }
  func.func @transform_2(%arg0: i32, %arg1: i32, %arg2: i32) -> (i32, i32) {
    %c0_i32 = arith.constant 0 : i32
    return %arg0, %arg1 : i32, i32
  }
  func.func @transform_3(%arg0: i32, %arg1: i32, %arg2: i32) -> (i32, i32, i32) {
    %c0_i32 = arith.constant 0 : i32
    %c0_i32_0 = arith.constant 0 : i32
    return %arg0, %c0_i32, %arg1 : i32, i32, i32
  }
  func.func @transform_4(%arg0: i32, %arg1: i32, %arg2: i32) -> (i32, i32, i32) {
    %c0_i32 = arith.constant 0 : i32
    %c0_i32_0 = arith.constant 0 : i32
    return %arg0, %c0_i32, %arg1 : i32, i32, i32
  }
}

</mosaic_0001>

<llo_original>
// kernel: discriminator_forward.7
$region0: #{discriminator_forward.7}
  #allocation0 [shape = 'u32[]', space=smem, size = 0x4, offset = 0x4, fixed_abs, tag = 'smem constant byte address 0x4 - core index']
  #allocation1 [shape = 'u32[72,128]{1,0:T(1,128)}', space=vmem, size = 0x9000, scoped, tag = 'internal scratch']
  #allocation2 [shape = 'f32[192,128]{1,0:T(8,128)}', space=vmem, size = 0x18000, scoped, tag = 'scratch operand']
  %s0 = inlined_call_operand.vmem [shape: bf16[192,128], index: 0, kind: input, shape index: {}]
  %s1 = inlined_call_operand.vmem [shape: bf16[128,128], index: 1, kind: input, shape index: {}]
  %s2 = inlined_call_operand.vmem [shape: f32[1,128], index: 2, kind: input, shape index: {}]
  %s3 = inlined_call_operand.vmem [shape: bf16[192,128], index: 3, kind: output, shape index: {}]
  %s4 = sld [smem:[#allocation0]]
  $region30: #{discriminator_forward.7} parent=0
    _
  %s6 = ssub.s32 1, %s4
  %s7 = scalar_select 0, %s6, %s4
  // Predicated region
  $region2: #{discriminator_forward.7} parent=0 // pred_check
    _
  $region3: #{discriminator_forward.7} parent=0 // pred_check_branch
    %9 = sbr.rel (0) target = $region5
  $region4: #{discriminator_forward.7} parent=0 // pred_region
    _
  $region5: #{discriminator_forward.7} parent=0 // pred_fallthru
    _
  // Predicated region
  $region6: #{discriminator_forward.7} parent=0 // pred_check
    _
  $region7: #{discriminator_forward.7} parent=0 // pred_check_branch
    %11 = sbr.rel (0) target = $region9
  $region8: #{discriminator_forward.7} parent=0 // pred_region
    _
  $region9: #{discriminator_forward.7} parent=0 // pred_fallthru
    _
  // Predicated region
  $region10: #{discriminator_forward.7} parent=0 // pred_check
    _
  $region11: #{discriminator_forward.7} parent=0 // pred_check_branch
    %13 = sbr.rel (0) target = $region13
  $region12: #{discriminator_forward.7} parent=0 // pred_region
    _
  $region13: #{discriminator_forward.7} parent=0 // pred_fallthru
    _
  %p14 = scmp.eq.s32.totalorder 0, 0
  // Predicated region
  $region14: #{discriminator_forward.7} parent=0 // pred_check
    %p15 = pneg %p14
  $region15: #{discriminator_forward.7} parent=0 // pred_check_branch
    %17 = sbr.rel (%p15) target = $region17
  $region16: #{discriminator_forward.7} parent=0 // pred_region
    %18 = vst [vmem:[#allocation2] sm:$0xff] 0.0
    %19 = vst [vmem:[#allocation2 + $0x8] sm:$0xff] 0.0
    %20 = vst [vmem:[#allocation2 + $0x10] sm:$0xff] 0.0
    %21 = vst [vmem:[#allocation2 + $0x18] sm:$0xff] 0.0
    %22 = vst [vmem:[#allocation2 + $0x20] sm:$0xff] 0.0
    %23 = vst [vmem:[#allocation2 + $0x28] sm:$0xff] 0.0
    %24 = vst [vmem:[#allocation2 + $0x30] sm:$0xff] 0.0
    %25 = vst [vmem:[#allocation2 + $0x38] sm:$0xff] 0.0
    %26 = vst [vmem:[#allocation2 + $0x40] sm:$0xff] 0.0
    %27 = vst [vmem:[#allocation2 + $0x48] sm:$0xff] 0.0
    %28 = vst [vmem:[#allocation2 + $0x50] sm:$0xff] 0.0
    %29 = vst [vmem:[#allocation2 + $0x58] sm:$0xff] 0.0
    %30 = vst [vmem:[#allocation2 + $0x60] sm:$0xff] 0.0
    %31 = vst [vmem:[#allocation2 + $0x68] sm:$0xff] 0.0
    %32 = vst [vmem:[#allocation2 + $0x70] sm:$0xff] 0.0
    %33 = vst [vmem:[#allocation2 + $0x78] sm:$0xff] 0.0
    %34 = vst [vmem:[#allocation2 + $0x80] sm:$0xff] 0.0
    %35 = vst [vmem:[#allocation2 + $0x88] sm:$0xff] 0.0
    %36 = vst [vmem:[#allocation2 + $0x90] sm:$0xff] 0.0
    %37 = vst [vmem:[#allocation2 + $0x98] sm:$0xff] 0.0
    %38 = vst [vmem:[#allocation2 + $0xa0] sm:$0xff] 0.0
    %39 = vst [vmem:[#allocation2 + $0xa8] sm:$0xff] 0.0
    %40 = vst [vmem:[#allocation2 + $0xb0] sm:$0xff] 0.0
    %41 = vst [vmem:[#allocation2 + $0xb8] sm:$0xff] 0.0
  $region17: #{discriminator_forward.7} parent=0 // pred_fallthru
    _
  %v42 = vld [vmem:[#allocation2] sm:$0xff]
  %v43 = vld [vmem:[#allocation2 + $0x8] sm:$0xff]
  %v44 = vld [vmem:[#allocation2 + $0x10] sm:$0xff]
  %v45 = vld [vmem:[#allocation2 + $0x18] sm:$0xff]
  %v46 = vld [vmem:[#allocation2 + $0x20] sm:$0xff]
  %v47 = vld [vmem:[#allocation2 + $0x28] sm:$0xff]
  %v48 = vld [vmem:[#allocation2 + $0x30] sm:$0xff]
  %v49 = vld [vmem:[#allocation2 + $0x38] sm:$0xff]
  %v50 = vld [vmem:[#allocation2 + $0x40] sm:$0xff]
  %v51 = vld [vmem:[#allocation2 + $0x48] sm:$0xff]
  %v52 = vld [vmem:[#allocation2 + $0x50] sm:$0xff]
  %v53 = vld [vmem:[#allocation2 + $0x58] sm:$0xff]
  %v54 = vld [vmem:[#allocation2 + $0x60] sm:$0xff]
  %v55 = vld [vmem:[#allocation2 + $0x68] sm:$0xff]
  %v56 = vld [vmem:[#allocation2 + $0x70] sm:$0xff]
  %v57 = vld [vmem:[#allocation2 + $0x78] sm:$0xff]
  %v58 = vld [vmem:[#allocation2 + $0x80] sm:$0xff]
  %v59 = vld [vmem:[#allocation2 + $0x88] sm:$0xff]
  %v60 = vld [vmem:[#allocation2 + $0x90] sm:$0xff]
  %v61 = vld [vmem:[#allocation2 + $0x98] sm:$0xff]
  %v62 = vld [vmem:[#allocation2 + $0xa0] sm:$0xff]
  %v63 = vld [vmem:[#allocation2 + $0xa8] sm:$0xff]
  %v64 = vld [vmem:[#allocation2 + $0xb0] sm:$0xff]
  %v65 = vld [vmem:[#allocation2 + $0xb8] sm:$0xff]
  %v66 = vld [vmem:[%s0] sm:$0xf]
  %v67 = vld [vmem:[%s0 + $0x4] sm:$0xf]
  %v68 = vld [vmem:[%s0 + $0x8] sm:$0xf]
  %v69 = vld [vmem:[%s0 + $0xc] sm:$0xf]
  %v70 = vld [vmem:[%s0 + $0x10] sm:$0xf]
  %v71 = vld [vmem:[%s0 + $0x14] sm:$0xf]
  %v72 = vld [vmem:[%s0 + $0x18] sm:$0xf]
  %v73 = vld [vmem:[%s0 + $0x1c] sm:$0xf]
  %v74 = vld [vmem:[%s0 + $0x20] sm:$0xf]
  %v75 = vld [vmem:[%s0 + $0x24] sm:$0xf]
  %v76 = vld [vmem:[%s0 + $0x28] sm:$0xf]
  %v77 = vld [vmem:[%s0 + $0x2c] sm:$0xf]
  %v78 = vld [vmem:[%s0 + $0x30] sm:$0xf]
  %v79 = vld [vmem:[%s0 + $0x34] sm:$0xf]
  %v80 = vld [vmem:[%s0 + $0x38] sm:$0xf]
  %v81 = vld [vmem:[%s0 + $0x3c] sm:$0xf]
  %v82 = vld [vmem:[%s0 + $0x40] sm:$0xf]
  %v83 = vld [vmem:[%s0 + $0x44] sm:$0xf]
  %v84 = vld [vmem:[%s0 + $0x48] sm:$0xf]
  %v85 = vld [vmem:[%s0 + $0x4c] sm:$0xf]
  %v86 = vld [vmem:[%s0 + $0x50] sm:$0xf]
  %v87 = vld [vmem:[%s0 + $0x54] sm:$0xf]
  %v88 = vld [vmem:[%s0 + $0x58] sm:$0xf]
  %v89 = vld [vmem:[%s0 + $0x5c] sm:$0xf]
  %v90 = vld [vmem:[%s1] sm:$0xf]
  %v91 = vld [vmem:[%s1 + $0x4] sm:$0xf]
  %v92 = vld [vmem:[%s1 + $0x8] sm:$0xf]
  %v93 = vld [vmem:[%s1 + $0xc] sm:$0xf]
  %v94 = vld [vmem:[%s1 + $0x10] sm:$0xf]
  %v95 = vld [vmem:[%s1 + $0x14] sm:$0xf]
  %v96 = vld [vmem:[%s1 + $0x18] sm:$0xf]
  %v97 = vld [vmem:[%s1 + $0x1c] sm:$0xf]
  %v98 = vld [vmem:[%s1 + $0x20] sm:$0xf]
  %v99 = vld [vmem:[%s1 + $0x24] sm:$0xf]
  %v100 = vld [vmem:[%s1 + $0x28] sm:$0xf]
  %v101 = vld [vmem:[%s1 + $0x2c] sm:$0xf]
  %v102 = vld [vmem:[%s1 + $0x30] sm:$0xf]
  %v103 = vld [vmem:[%s1 + $0x34] sm:$0xf]
  %v104 = vld [vmem:[%s1 + $0x38] sm:$0xf]
  %v105 = vld [vmem:[%s1 + $0x3c] sm:$0xf]
  %v130 = vunpack.c.l.b16 %v66
  %v131 = vunpack.c.l.b16 %v67
  %v132 = vunpack.c.l.b16 %v68
  %v133 = vunpack.c.l.b16 %v69
  %v134 = vunpack.c.l.b16 %v70
  %v135 = vunpack.c.l.b16 %v71
  %v136 = vunpack.c.l.b16 %v72
  %v137 = vunpack.c.l.b16 %v73
  %v138 = vunpack.c.l.b16 %v74
  %v139 = vunpack.c.l.b16 %v75
  %v140 = vunpack.c.l.b16 %v76
  %v141 = vunpack.c.l.b16 %v77
  %v142 = vunpack.c.l.b16 %v78
  %v143 = vunpack.c.l.b16 %v79
  %v144 = vunpack.c.l.b16 %v80
  %v145 = vunpack.c.l.b16 %v81
  %v146 = vunpack.c.l.b16 %v82
  %v147 = vunpack.c.l.b16 %v83
  %v148 = vunpack.c.l.b16 %v84
  %v149 = vunpack.c.l.b16 %v85
  %v150 = vunpack.c.l.b16 %v86
  %v151 = vunpack.c.l.b16 %v87
  %v152 = vunpack.c.l.b16 %v88
  %v153 = vunpack.c.l.b16 %v89
  %v154 = vpack.c.b16 %v131, %v130
  %v155 = vpack.c.b16 %v133, %v132
  %v156 = vpack.c.b16 %v135, %v134
  %v157 = vpack.c.b16 %v137, %v136
  %v158 = vpack.c.b16 %v139, %v138
  %v159 = vpack.c.b16 %v141, %v140
  %v160 = vpack.c.b16 %v143, %v142
  %v161 = vpack.c.b16 %v145, %v144
  %v162 = vpack.c.b16 %v147, %v146
  %v163 = vpack.c.b16 %v149, %v148
  %v164 = vpack.c.b16 %v151, %v150
  %v165 = vpack.c.b16 %v153, %v152
  %v194 = vunpack.c.l.b16 %v90
  %v195 = vunpack.c.l.b16 %v91
  %v196 = vunpack.c.l.b16 %v92
  %v197 = vunpack.c.l.b16 %v93
  %v198 = vunpack.c.l.b16 %v94
  %v199 = vunpack.c.l.b16 %v95
  %v200 = vunpack.c.l.b16 %v96
  %v201 = vunpack.c.l.b16 %v97
  %v202 = vunpack.c.l.b16 %v98
  %v203 = vunpack.c.l.b16 %v99
  %v204 = vunpack.c.l.b16 %v100
  %v205 = vunpack.c.l.b16 %v101
  %v206 = vunpack.c.l.b16 %v102
  %v207 = vunpack.c.l.b16 %v103
  %v208 = vunpack.c.l.b16 %v104
  %v209 = vunpack.c.l.b16 %v105
  %v210 = vpack.c.b16 %v195, %v194
  %v211 = vpack.c.b16 %v197, %v196
  %v212 = vpack.c.b16 %v199, %v198
  %v213 = vpack.c.b16 %v201, %v200
  %v214 = vpack.c.b16 %v203, %v202
  %v215 = vpack.c.b16 %v205, %v204
  %v216 = vpack.c.b16 %v207, %v206
  %v217 = vpack.c.b16 %v209, %v208
  %226 = vmatpush.bf16.msra.mxu0 %v217
  %227 = vmatpush.bf16.msra.mxu0 %v216
  %228 = vmatpush.bf16.msra.mxu0 %v215
  %229 = vmatpush.bf16.msra.mxu0 %v214
  %230 = vmatpush.bf16.msra.mxu0 %v213
  %231 = vmatpush.bf16.msra.mxu0 %v212
  %232 = vmatpush.bf16.msra.mxu0 %v211
  %233 = vmatpush.bf16.msra.mxu0 %v210
  %234 = vmatmul.bf16.gmra.mxu0 %v154
  %v235 = vpop.f32.mrf.mxu0
  %v236 = vadd.f32 0.0, %v235
  %v237 = vpop.f32.mrf.mxu0
  %v238 = vadd.f32 0.0, %v237
  %239 = vmatmul.bf16.gmra.mxu0 %v155
  %v240 = vpop.f32.mrf.mxu0
  %v241 = vadd.f32 0.0, %v240
  %v242 = vpop.f32.mrf.mxu0
  %v243 = vadd.f32 0.0, %v242
  %244 = vmatmul.bf16.gmra.mxu0 %v156
  %v245 = vpop.f32.mrf.mxu0
  %v246 = vadd.f32 0.0, %v245
  %v247 = vpop.f32.mrf.mxu0
  %v248 = vadd.f32 0.0, %v247
  %249 = vmatmul.bf16.gmra.mxu0 %v157
  %v250 = vpop.f32.mrf.mxu0
  %v251 = vadd.f32 0.0, %v250
  %v252 = vpop.f32.mrf.mxu0
  %v253 = vadd.f32 0.0, %v252
  %254 = vmatmul.bf16.gmra.mxu0 %v158
  %v255 = vpop.f32.mrf.mxu0
  %v256 = vadd.f32 0.0, %v255
  %v257 = vpop.f32.mrf.mxu0
  %v258 = vadd.f32 0.0, %v257
  %259 = vmatmul.bf16.gmra.mxu0 %v159
  %v260 = vpop.f32.mrf.mxu0
  %v261 = vadd.f32 0.0, %v260
  %v262 = vpop.f32.mrf.mxu0
  %v263 = vadd.f32 0.0, %v262
  %264 = vmatmul.bf16.gmra.mxu0 %v160
  %v265 = vpop.f32.mrf.mxu0
  %v266 = vadd.f32 0.0, %v265
  %v267 = vpop.f32.mrf.mxu0
  %v268 = vadd.f32 0.0, %v267
  %269 = vmatmul.bf16.gmra.mxu0 %v161
  %v270 = vpop.f32.mrf.mxu0
  %v271 = vadd.f32 0.0, %v270
  %v272 = vpop.f32.mrf.mxu0
  %v273 = vadd.f32 0.0, %v272
  %274 = vmatmul.bf16.gmra.mxu0 %v162
  %v275 = vpop.f32.mrf.mxu0
  %v276 = vadd.f32 0.0, %v275
  %v277 = vpop.f32.mrf.mxu0
  %v278 = vadd.f32 0.0, %v277
  %279 = vmatmul.bf16.gmra.mxu0 %v163
  %v280 = vpop.f32.mrf.mxu0
  %v281 = vadd.f32 0.0, %v280
  %v282 = vpop.f32.mrf.mxu0
  %v283 = vadd.f32 0.0, %v282
  %284 = vmatmul.bf16.gmra.mxu0 %v164
  %v285 = vpop.f32.mrf.mxu0
  %v286 = vadd.f32 0.0, %v285
  %v287 = vpop.f32.mrf.mxu0
  %v288 = vadd.f32 0.0, %v287
  %289 = vmatmul.bf16.gmra.mxu0 %v165
  %v290 = vpop.f32.mrf.mxu0
  %v291 = vadd.f32 0.0, %v290
  %v292 = vpop.f32.mrf.mxu0
  %v293 = vadd.f32 0.0, %v292
  %294 = vdwg.mxu0
  %v295 = vadd.f32 %v42, %v236
  %v296 = vadd.f32 %v43, %v238
  %v297 = vadd.f32 %v44, %v241
  %v298 = vadd.f32 %v45, %v243
  %v299 = vadd.f32 %v46, %v246
  %v300 = vadd.f32 %v47, %v248
  %v301 = vadd.f32 %v48, %v251
  %v302 = vadd.f32 %v49, %v253
  %v303 = vadd.f32 %v50, %v256
  %v304 = vadd.f32 %v51, %v258
  %v305 = vadd.f32 %v52, %v261
  %v306 = vadd.f32 %v53, %v263
  %v307 = vadd.f32 %v54, %v266
  %v308 = vadd.f32 %v55, %v268
  %v309 = vadd.f32 %v56, %v271
  %v310 = vadd.f32 %v57, %v273
  %v311 = vadd.f32 %v58, %v276
  %v312 = vadd.f32 %v59, %v278
  %v313 = vadd.f32 %v60, %v281
  %v314 = vadd.f32 %v61, %v283
  %v315 = vadd.f32 %v62, %v286
  %v316 = vadd.f32 %v63, %v288
  %v317 = vadd.f32 %v64, %v291
  %v318 = vadd.f32 %v65, %v293
  %319 = vst [vmem:[#allocation2] sm:$0xff] %v295
  %320 = vst [vmem:[#allocation2 + $0x8] sm:$0xff] %v296
  %321 = vst [vmem:[#allocation2 + $0x10] sm:$0xff] %v297
  %322 = vst [vmem:[#allocation2 + $0x18] sm:$0xff] %v298
  %323 = vst [vmem:[#allocation2 + $0x20] sm:$0xff] %v299
  %324 = vst [vmem:[#allocation2 + $0x28] sm:$0xff] %v300
  %325 = vst [vmem:[#allocation2 + $0x30] sm:$0xff] %v301
  %326 = vst [vmem:[#allocation2 + $0x38] sm:$0xff] %v302
  %327 = vst [vmem:[#allocation2 + $0x40] sm:$0xff] %v303
  %328 = vst [vmem:[#allocation2 + $0x48] sm:$0xff] %v304
  %329 = vst [vmem:[#allocation2 + $0x50] sm:$0xff] %v305
  %330 = vst [vmem:[#allocation2 + $0x58] sm:$0xff] %v306
  %331 = vst [vmem:[#allocation2 + $0x60] sm:$0xff] %v307
  %332 = vst [vmem:[#allocation2 + $0x68] sm:$0xff] %v308
  %333 = vst [vmem:[#allocation2 + $0x70] sm:$0xff] %v309
  %334 = vst [vmem:[#allocation2 + $0x78] sm:$0xff] %v310
  %335 = vst [vmem:[#allocation2 + $0x80] sm:$0xff] %v311
  %336 = vst [vmem:[#allocation2 + $0x88] sm:$0xff] %v312
  %337 = vst [vmem:[#allocation2 + $0x90] sm:$0xff] %v313
  %338 = vst [vmem:[#allocation2 + $0x98] sm:$0xff] %v314
  %339 = vst [vmem:[#allocation2 + $0xa0] sm:$0xff] %v315
  %340 = vst [vmem:[#allocation2 + $0xa8] sm:$0xff] %v316
  %341 = vst [vmem:[#allocation2 + $0xb0] sm:$0xff] %v317
  %342 = vst [vmem:[#allocation2 + $0xb8] sm:$0xff] %v318
  // Predicated region
  $region18: #{discriminator_forward.7} parent=0 // pred_check
    %p343 = pneg %p14
  $region19: #{discriminator_forward.7} parent=0 // pred_check_branch
    %345 = sbr.rel (%p343) target = $region21
  $region20: #{discriminator_forward.7} parent=0 // pred_region
    %v346 = vld [vmem:[#allocation2] sm:$0xff]
    %v347 = vld [vmem:[#allocation2 + $0x8] sm:$0xff]
    %v348 = vld [vmem:[#allocation2 + $0x10] sm:$0xff]
    %v349 = vld [vmem:[#allocation2 + $0x18] sm:$0xff]
    %v350 = vld [vmem:[#allocation2 + $0x20] sm:$0xff]
    %v351 = vld [vmem:[#allocation2 + $0x28] sm:$0xff]
    %v352 = vld [vmem:[#allocation2 + $0x30] sm:$0xff]
    %v353 = vld [vmem:[#allocation2 + $0x38] sm:$0xff]
    %v354 = vld [vmem:[#allocation2 + $0x40] sm:$0xff]
    %v355 = vld [vmem:[#allocation2 + $0x48] sm:$0xff]
    %v356 = vld [vmem:[#allocation2 + $0x50] sm:$0xff]
    %v357 = vld [vmem:[#allocation2 + $0x58] sm:$0xff]
    %v358 = vld [vmem:[#allocation2 + $0x60] sm:$0xff]
    %v359 = vld [vmem:[#allocation2 + $0x68] sm:$0xff]
    %v360 = vld [vmem:[#allocation2 + $0x70] sm:$0xff]
    %v361 = vld [vmem:[#allocation2 + $0x78] sm:$0xff]
    %v362 = vld [vmem:[#allocation2 + $0x80] sm:$0xff]
    %v363 = vld [vmem:[#allocation2 + $0x88] sm:$0xff]
    %v364 = vld [vmem:[#allocation2 + $0x90] sm:$0xff]
    %v365 = vld [vmem:[#allocation2 + $0x98] sm:$0xff]
    %v366 = vld [vmem:[#allocation2 + $0xa0] sm:$0xff]
    %v367 = vld [vmem:[#allocation2 + $0xa8] sm:$0xff]
    %v368 = vld [vmem:[#allocation2 + $0xb0] sm:$0xff]
    %v369 = vld [vmem:[#allocation2 + $0xb8] sm:$0xff]
    %v370 = vld [vmem:[%s2] sm:$0x1]
    %v372 = vperm.slane %v370, 0
    %v374 = vadd.f32 %v346, %v372
    %v375 = vadd.f32 %v347, %v372
    %v376 = vadd.f32 %v348, %v372
    %v377 = vadd.f32 %v349, %v372
    %v378 = vadd.f32 %v350, %v372
    %v379 = vadd.f32 %v351, %v372
    %v380 = vadd.f32 %v352, %v372
    %v381 = vadd.f32 %v353, %v372
    %v382 = vadd.f32 %v354, %v372
    %v383 = vadd.f32 %v355, %v372
    %v384 = vadd.f32 %v356, %v372
    %v385 = vadd.f32 %v357, %v372
    %v386 = vadd.f32 %v358, %v372
    %v387 = vadd.f32 %v359, %v372
    %v388 = vadd.f32 %v360, %v372
    %v389 = vadd.f32 %v361, %v372
    %v390 = vadd.f32 %v362, %v372
    %v391 = vadd.f32 %v363, %v372
    %v392 = vadd.f32 %v364, %v372
    %v393 = vadd.f32 %v365, %v372
    %v394 = vadd.f32 %v366, %v372
    %v395 = vadd.f32 %v367, %v372
    %v396 = vadd.f32 %v368, %v372
    %v397 = vadd.f32 %v369, %v372
    %v398 = vmul.f32 %v374, 0.2
    %v399 = vmul.f32 %v375, 0.2
    %v400 = vmul.f32 %v376, 0.2
    %v401 = vmul.f32 %v377, 0.2
    %v402 = vmul.f32 %v378, 0.2
    %v403 = vmul.f32 %v379, 0.2
    %v404 = vmul.f32 %v380, 0.2
    %v405 = vmul.f32 %v381, 0.2
    %v406 = vmul.f32 %v382, 0.2
    %v407 = vmul.f32 %v383, 0.2
    %v408 = vmul.f32 %v384, 0.2
    %v409 = vmul.f32 %v385, 0.2
    %v410 = vmul.f32 %v386, 0.2
    %v411 = vmul.f32 %v387, 0.2
    %v412 = vmul.f32 %v388, 0.2
    %v413 = vmul.f32 %v389, 0.2
    %v414 = vmul.f32 %v390, 0.2
    %v415 = vmul.f32 %v391, 0.2
    %v416 = vmul.f32 %v392, 0.2
    %v417 = vmul.f32 %v393, 0.2
    %v418 = vmul.f32 %v394, 0.2
    %v419 = vmul.f32 %v395, 0.2
    %v420 = vmul.f32 %v396, 0.2
    %v421 = vmul.f32 %v397, 0.2
    %v422 = vmax.f32 %v374, %v398
    %v423 = vmax.f32 %v375, %v399
    %v424 = vmax.f32 %v376, %v400
    %v425 = vmax.f32 %v377, %v401
    %v426 = vmax.f32 %v378, %v402
    %v427 = vmax.f32 %v379, %v403
    %v428 = vmax.f32 %v380, %v404
    %v429 = vmax.f32 %v381, %v405
    %v430 = vmax.f32 %v382, %v406
    %v431 = vmax.f32 %v383, %v407
    %v432 = vmax.f32 %v384, %v408
    %v433 = vmax.f32 %v385, %v409
    %v434 = vmax.f32 %v386, %v410
    %v435 = vmax.f32 %v387, %v411
    %v436 = vmax.f32 %v388, %v412
    %v437 = vmax.f32 %v389, %v413
    %v438 = vmax.f32 %v390, %v414
    %v439 = vmax.f32 %v391, %v415
    %v440 = vmax.f32 %v392, %v416
    %v441 = vmax.f32 %v393, %v417
    %v442 = vmax.f32 %v394, %v418
    %v443 = vmax.f32 %v395, %v419
    %v444 = vmax.f32 %v396, %v420
    %v445 = vmax.f32 %v397, %v421
    %v446 = vpack.c.bf16 %v422, %v422
    %v447 = vpack.c.bf16 %v423, %v423
    %v448 = vpack.c.bf16 %v424, %v424
    %v449 = vpack.c.bf16 %v425, %v425
    %v450 = vpack.c.bf16 %v426, %v426
    %v451 = vpack.c.bf16 %v427, %v427
    %v452 = vpack.c.bf16 %v428, %v428
    %v453 = vpack.c.bf16 %v429, %v429
    %v454 = vpack.c.bf16 %v430, %v430
    %v455 = vpack.c.bf16 %v431, %v431
    %v456 = vpack.c.bf16 %v432, %v432
    %v457 = vpack.c.bf16 %v433, %v433
    %v458 = vpack.c.bf16 %v434, %v434
    %v459 = vpack.c.bf16 %v435, %v435
    %v460 = vpack.c.bf16 %v436, %v436
    %v461 = vpack.c.bf16 %v437, %v437
    %v462 = vpack.c.bf16 %v438, %v438
    %v463 = vpack.c.bf16 %v439, %v439
    %v464 = vpack.c.bf16 %v440, %v440
    %v465 = vpack.c.bf16 %v441, %v441
    %v466 = vpack.c.bf16 %v442, %v442
    %v467 = vpack.c.bf16 %v443, %v443
    %v468 = vpack.c.bf16 %v444, %v444
    %v469 = vpack.c.bf16 %v445, %v445
    %470 = vst [vmem:[%s3] sm:$0xf] %v446
    %471 = vst [vmem:[%s3 + $0x4] sm:$0xf] %v447
    %472 = vst [vmem:[%s3 + $0x8] sm:$0xf] %v448
    %473 = vst [vmem:[%s3 + $0xc] sm:$0xf] %v449
    %474 = vst [vmem:[%s3 + $0x10] sm:$0xf] %v450
    %475 = vst [vmem:[%s3 + $0x14] sm:$0xf] %v451
    %476 = vst [vmem:[%s3 + $0x18] sm:$0xf] %v452
    %477 = vst [vmem:[%s3 + $0x1c] sm:$0xf] %v453
    %478 = vst [vmem:[%s3 + $0x20] sm:$0xf] %v454
    %479 = vst [vmem:[%s3 + $0x24] sm:$0xf] %v455
    %480 = vst [vmem:[%s3 + $0x28] sm:$0xf] %v456
    %481 = vst [vmem:[%s3 + $0x2c] sm:$0xf] %v457
    %482 = vst [vmem:[%s3 + $0x30] sm:$0xf] %v458
    %483 = vst [vmem:[%s3 + $0x34] sm:$0xf] %v459
    %484 = vst [vmem:[%s3 + $0x38] sm:$0xf] %v460
    %485 = vst [vmem:[%s3 + $0x3c] sm:$0xf] %v461
    %486 = vst [vmem:[%s3 + $0x40] sm:$0xf] %v462
    %487 = vst [vmem:[%s3 + $0x44] sm:$0xf] %v463
    %488 = vst [vmem:[%s3 + $0x48] sm:$0xf] %v464
    %489 = vst [vmem:[%s3 + $0x4c] sm:$0xf] %v465
    %490 = vst [vmem:[%s3 + $0x50] sm:$0xf] %v466
    %491 = vst [vmem:[%s3 + $0x54] sm:$0xf] %v467
    %492 = vst [vmem:[%s3 + $0x58] sm:$0xf] %v468
    %493 = vst [vmem:[%s3 + $0x5c] sm:$0xf] %v469
  $region21: #{discriminator_forward.7} parent=0 // pred_fallthru
    _
  // Predicated region
  $region22: #{discriminator_forward.7} parent=0 // pred_check
    _
  $region23: #{discriminator_forward.7} parent=0 // pred_check_branch
    %495 = sbr.rel (0) target = $region25
  $region24: #{discriminator_forward.7} parent=0 // pred_region
    _
  $region25: #{discriminator_forward.7} parent=0 // pred_fallthru
    _
  // Predicated region
  $region26: #{discriminator_forward.7} parent=0 // pred_check
    _
  $region27: #{discriminator_forward.7} parent=0 // pred_check_branch
    %497 = sbr.rel (0) target = $region29
  $region28: #{discriminator_forward.7} parent=0 // pred_region
    _
  $region29: #{discriminator_forward.7} parent=0 // pred_fallthru
    _

// kernel: discriminator_forward.8
$region0: #{discriminator_forward.8}
  #allocation0 [shape = 'u32[]', space=smem, size = 0x4, offset = 0x4, fixed_abs, tag = 'smem constant byte address 0x4 - core index']
  #allocation1 [shape = 'u32[72,128]{1,0:T(1,128)}', space=vmem, size = 0x9000, scoped, tag = 'internal scratch']
  #allocation2 [shape = 'f32[64,128]{1,0:T(8,128)}', space=vmem, size = 0x8000, scoped, tag = 'scratch operand']
  %s0 = inlined_call_operand.vmem [shape: bf16[64,256], index: 0, kind: input, shape index: {}]
  %s1 = inlined_call_operand.vmem [shape: bf16[256,128], index: 1, kind: input, shape index: {}]
  %s2 = inlined_call_operand.vmem [shape: bf16[64,128], index: 2, kind: output, shape index: {0}]
  %s3 = inlined_call_operand.vmem [shape: f32[1,1,128], index: 3, kind: output, shape index: {1}]
  %s4 = inlined_call_operand.vmem [shape: f32[1,1,128], index: 4, kind: output, shape index: {2}]
  %5 = xla_tuple %s2, %s3, %s4
  %s6 = sld [smem:[#allocation0]]
  $region42: #{discriminator_forward.8} parent=0
    _
  %s8 = ssub.s32 1, %s6
  %s9 = scalar_select 0, %s8, %s6
  // Predicated region
  $region2: #{discriminator_forward.8} parent=0 // pred_check
    _
  $region3: #{discriminator_forward.8} parent=0 // pred_check_branch
    %11 = sbr.rel (0) target = $region5
  $region4: #{discriminator_forward.8} parent=0 // pred_region
    _
  $region5: #{discriminator_forward.8} parent=0 // pred_fallthru
    _
  // Predicated region
  $region6: #{discriminator_forward.8} parent=0 // pred_check
    _
  $region7: #{discriminator_forward.8} parent=0 // pred_check_branch
    %13 = sbr.rel (0) target = $region9
  $region8: #{discriminator_forward.8} parent=0 // pred_region
    _
  $region9: #{discriminator_forward.8} parent=0 // pred_fallthru
    _
  %p14 = scmp.eq.s32.totalorder 0, 0
  // Predicated region
  $region10: #{discriminator_forward.8} parent=0 // pred_check
    %p15 = pneg %p14
  $region11: #{discriminator_forward.8} parent=0 // pred_check_branch
    %17 = sbr.rel (%p15) target = $region13
  $region12: #{discriminator_forward.8} parent=0 // pred_region
    %18 = vst [vmem:[#allocation2] sm:$0xff] 0.0
    %19 = vst [vmem:[#allocation2 + $0x8] sm:$0xff] 0.0
    %20 = vst [vmem:[#allocation2 + $0x10] sm:$0xff] 0.0
    %21 = vst [vmem:[#allocation2 + $0x18] sm:$0xff] 0.0
    %22 = vst [vmem:[#allocation2 + $0x20] sm:$0xff] 0.0
    %23 = vst [vmem:[#allocation2 + $0x28] sm:$0xff] 0.0
    %24 = vst [vmem:[#allocation2 + $0x30] sm:$0xff] 0.0
    %25 = vst [vmem:[#allocation2 + $0x38] sm:$0xff] 0.0
  $region13: #{discriminator_forward.8} parent=0 // pred_fallthru
    _
  %v26 = vld [vmem:[#allocation2] sm:$0xff]
  %v27 = vld [vmem:[#allocation2 + $0x8] sm:$0xff]
  %v28 = vld [vmem:[#allocation2 + $0x10] sm:$0xff]
  %v29 = vld [vmem:[#allocation2 + $0x18] sm:$0xff]
  %v30 = vld [vmem:[#allocation2 + $0x20] sm:$0xff]
  %v31 = vld [vmem:[#allocation2 + $0x28] sm:$0xff]
  %v32 = vld [vmem:[#allocation2 + $0x30] sm:$0xff]
  %v33 = vld [vmem:[#allocation2 + $0x38] sm:$0xff]
  %v34 = vld [vmem:[%s0] sm:$0xff]
  %v35 = vld [vmem:[%s0 + $0x8] sm:$0xff]
  %v36 = vld [vmem:[%s0 + $0x10] sm:$0xff]
  %v37 = vld [vmem:[%s0 + $0x18] sm:$0xff]
  %v38 = vld [vmem:[%s0 + $0x20] sm:$0xff]
  %v39 = vld [vmem:[%s0 + $0x28] sm:$0xff]
  %v40 = vld [vmem:[%s0 + $0x30] sm:$0xff]
  %v41 = vld [vmem:[%s0 + $0x38] sm:$0xff]
  %v42 = vld [vmem:[%s1] sm:$0xf]
  %v43 = vld [vmem:[%s1 + $0x4] sm:$0xf]
  %v44 = vld [vmem:[%s1 + $0x8] sm:$0xf]
  %v45 = vld [vmem:[%s1 + $0xc] sm:$0xf]
  %v46 = vld [vmem:[%s1 + $0x10] sm:$0xf]
  %v47 = vld [vmem:[%s1 + $0x14] sm:$0xf]
  %v48 = vld [vmem:[%s1 + $0x18] sm:$0xf]
  %v49 = vld [vmem:[%s1 + $0x1c] sm:$0xf]
  %v50 = vld [vmem:[%s1 + $0x20] sm:$0xf]
  %v51 = vld [vmem:[%s1 + $0x24] sm:$0xf]
  %v52 = vld [vmem:[%s1 + $0x28] sm:$0xf]
  %v53 = vld [vmem:[%s1 + $0x2c] sm:$0xf]
  %v54 = vld [vmem:[%s1 + $0x30] sm:$0xf]
  %v55 = vld [vmem:[%s1 + $0x34] sm:$0xf]
  %v56 = vld [vmem:[%s1 + $0x38] sm:$0xf]
  %v57 = vld [vmem:[%s1 + $0x3c] sm:$0xf]
  %v58 = vld [vmem:[%s1 + $0x40] sm:$0xf]
  %v59 = vld [vmem:[%s1 + $0x44] sm:$0xf]
  %v60 = vld [vmem:[%s1 + $0x48] sm:$0xf]
  %v61 = vld [vmem:[%s1 + $0x4c] sm:$0xf]
  %v62 = vld [vmem:[%s1 + $0x50] sm:$0xf]
  %v63 = vld [vmem:[%s1 + $0x54] sm:$0xf]
  %v64 = vld [vmem:[%s1 + $0x58] sm:$0xf]
  %v65 = vld [vmem:[%s1 + $0x5c] sm:$0xf]
  %v66 = vld [vmem:[%s1 + $0x60] sm:$0xf]
  %v67 = vld [vmem:[%s1 + $0x64] sm:$0xf]
  %v68 = vld [vmem:[%s1 + $0x68] sm:$0xf]
  %v69 = vld [vmem:[%s1 + $0x6c] sm:$0xf]
  %v70 = vld [vmem:[%s1 + $0x70] sm:$0xf]
  %v71 = vld [vmem:[%s1 + $0x74] sm:$0xf]
  %v72 = vld [vmem:[%s1 + $0x78] sm:$0xf]
  %v73 = vld [vmem:[%s1 + $0x7c] sm:$0xf]
  %v82 = vunpack.c.l.b16 %v34
  %v83 = vunpack.c.h.b16 %v34
  %v84 = vunpack.c.l.b16 %v35
  %v85 = vunpack.c.h.b16 %v35
  %v86 = vunpack.c.l.b16 %v36
  %v87 = vunpack.c.h.b16 %v36
  %v88 = vunpack.c.l.b16 %v37
  %v89 = vunpack.c.h.b16 %v37
  %v90 = vunpack.c.l.b16 %v38
  %v91 = vunpack.c.h.b16 %v38
  %v92 = vunpack.c.l.b16 %v39
  %v93 = vunpack.c.h.b16 %v39
  %v94 = vunpack.c.l.b16 %v40
  %v95 = vunpack.c.h.b16 %v40
  %v96 = vunpack.c.l.b16 %v41
  %v97 = vunpack.c.h.b16 %v41
  %v98 = vpack.c.b16 %v84, %v82
  %v99 = vpack.c.b16 %v85, %v83
  %v100 = vpack.c.b16 %v88, %v86
  %v101 = vpack.c.b16 %v89, %v87
  %v102 = vpack.c.b16 %v92, %v90
  %v103 = vpack.c.b16 %v93, %v91
  %v104 = vpack.c.b16 %v96, %v94
  %v105 = vpack.c.b16 %v97, %v95
  %v146 = vunpack.c.l.b16 %v42
  %v147 = vunpack.c.l.b16 %v43
  %v148 = vunpack.c.l.b16 %v44
  %v149 = vunpack.c.l.b16 %v45
  %v150 = vunpack.c.l.b16 %v46
  %v151 = vunpack.c.l.b16 %v47
  %v152 = vunpack.c.l.b16 %v48
  %v153 = vunpack.c.l.b16 %v49
  %v154 = vunpack.c.l.b16 %v50
  %v155 = vunpack.c.l.b16 %v51
  %v156 = vunpack.c.l.b16 %v52
  %v157 = vunpack.c.l.b16 %v53
  %v158 = vunpack.c.l.b16 %v54
  %v159 = vunpack.c.l.b16 %v55
  %v160 = vunpack.c.l.b16 %v56
  %v161 = vunpack.c.l.b16 %v57
  %v162 = vunpack.c.l.b16 %v58
  %v163 = vunpack.c.l.b16 %v59
  %v164 = vunpack.c.l.b16 %v60
  %v165 = vunpack.c.l.b16 %v61
  %v166 = vunpack.c.l.b16 %v62
  %v167 = vunpack.c.l.b16 %v63
  %v168 = vunpack.c.l.b16 %v64
  %v169 = vunpack.c.l.b16 %v65
  %v170 = vunpack.c.l.b16 %v66
  %v171 = vunpack.c.l.b16 %v67
  %v172 = vunpack.c.l.b16 %v68
  %v173 = vunpack.c.l.b16 %v69
  %v174 = vunpack.c.l.b16 %v70
  %v175 = vunpack.c.l.b16 %v71
  %v176 = vunpack.c.l.b16 %v72
  %v177 = vunpack.c.l.b16 %v73
  %v178 = vpack.c.b16 %v147, %v146
  %v179 = vpack.c.b16 %v149, %v148
  %v180 = vpack.c.b16 %v151, %v150
  %v181 = vpack.c.b16 %v153, %v152
  %v182 = vpack.c.b16 %v155, %v154
  %v183 = vpack.c.b16 %v157, %v156
  %v184 = vpack.c.b16 %v159, %v158
  %v185 = vpack.c.b16 %v161, %v160
  %v186 = vpack.c.b16 %v163, %v162
  %v187 = vpack.c.b16 %v165, %v164
  %v188 = vpack.c.b16 %v167, %v166
  %v189 = vpack.c.b16 %v169, %v168
  %v190 = vpack.c.b16 %v171, %v170
  %v191 = vpack.c.b16 %v173, %v172
  %v192 = vpack.c.b16 %v175, %v174
  %v193 = vpack.c.b16 %v177, %v176
  %210 = vmatpush.bf16.msra.mxu0 %v185
  %211 = vmatpush.bf16.msra.mxu0 %v184
  %212 = vmatpush.bf16.msra.mxu0 %v183
  %213 = vmatpush.bf16.msra.mxu0 %v182
  %214 = vmatpush.bf16.msra.mxu0 %v181
  %215 = vmatpush.bf16.msra.mxu0 %v180
  %216 = vmatpush.bf16.msra.mxu0 %v179
  %217 = vmatpush.bf16.msra.mxu0 %v178
  %218 = vmatmul.bf16.gmra.mxu0 %v98
  %v219 = vpop.f32.mrf.mxu0
  %v220 = vadd.f32 0.0, %v219
  %v221 = vpop.f32.mrf.mxu0
  %v222 = vadd.f32 0.0, %v221
  %223 = vmatmul.bf16.gmra.mxu0 %v100
  %v224 = vpop.f32.mrf.mxu0
  %v225 = vadd.f32 0.0, %v224
  %v226 = vpop.f32.mrf.mxu0
  %v227 = vadd.f32 0.0, %v226
  %228 = vmatmul.bf16.gmra.mxu0 %v102
  %v229 = vpop.f32.mrf.mxu0
  %v230 = vadd.f32 0.0, %v229
  %v231 = vpop.f32.mrf.mxu0
  %v232 = vadd.f32 0.0, %v231
  %233 = vmatmul.bf16.gmra.mxu0 %v104
  %v234 = vpop.f32.mrf.mxu0
  %v235 = vadd.f32 0.0, %v234
  %v236 = vpop.f32.mrf.mxu0
  %v237 = vadd.f32 0.0, %v236
  %238 = vdwg.mxu0
  %239 = vmatpush.bf16.msra.mxu0 %v193
  %240 = vmatpush.bf16.msra.mxu0 %v192
  %241 = vmatpush.bf16.msra.mxu0 %v191
  %242 = vmatpush.bf16.msra.mxu0 %v190
  %243 = vmatpush.bf16.msra.mxu0 %v189
  %244 = vmatpush.bf16.msra.mxu0 %v188
  %245 = vmatpush.bf16.msra.mxu0 %v187
  %246 = vmatpush.bf16.msra.mxu0 %v186
  %247 = vmatmul.bf16.gmra.mxu0 %v99
  %v248 = vpop.f32.mrf.mxu0
  %v249 = vadd.f32 %v220, %v248
  %v250 = vpop.f32.mrf.mxu0
  %v251 = vadd.f32 %v222, %v250
  %252 = vmatmul.bf16.gmra.mxu0 %v101
  %v253 = vpop.f32.mrf.mxu0
  %v254 = vadd.f32 %v225, %v253
  %v255 = vpop.f32.mrf.mxu0
  %v256 = vadd.f32 %v227, %v255
  %257 = vmatmul.bf16.gmra.mxu0 %v103
  %v258 = vpop.f32.mrf.mxu0
  %v259 = vadd.f32 %v230, %v258
  %v260 = vpop.f32.mrf.mxu0
  %v261 = vadd.f32 %v232, %v260
  %262 = vmatmul.bf16.gmra.mxu0 %v105
  %v263 = vpop.f32.mrf.mxu0
  %v264 = vadd.f32 %v235, %v263
  %v265 = vpop.f32.mrf.mxu0
  %v266 = vadd.f32 %v237, %v265
  %267 = vdwg.mxu0
  %v268 = vadd.f32 %v26, %v249
  %v269 = vadd.f32 %v27, %v251
  %v270 = vadd.f32 %v28, %v254
  %v271 = vadd.f32 %v29, %v256
  %v272 = vadd.f32 %v30, %v259
  %v273 = vadd.f32 %v31, %v261
  %v274 = vadd.f32 %v32, %v264
  %v275 = vadd.f32 %v33, %v266
  %276 = vst [vmem:[#allocation2] sm:$0xff] %v268
  %277 = vst [vmem:[#allocation2 + $0x8] sm:$0xff] %v269
  %278 = vst [vmem:[#allocation2 + $0x10] sm:$0xff] %v270
  %279 = vst [vmem:[#allocation2 + $0x18] sm:$0xff] %v271
  %280 = vst [vmem:[#allocation2 + $0x20] sm:$0xff] %v272
  %281 = vst [vmem:[#allocation2 + $0x28] sm:$0xff] %v273
  %282 = vst [vmem:[#allocation2 + $0x30] sm:$0xff] %v274
  %283 = vst [vmem:[#allocation2 + $0x38] sm:$0xff] %v275
  // Predicated region
  $region14: #{discriminator_forward.8} parent=0 // pred_check
    %p284 = pneg %p14
  $region15: #{discriminator_forward.8} parent=0 // pred_check_branch
    %286 = sbr.rel (%p284) target = $region17
  $region16: #{discriminator_forward.8} parent=0 // pred_region
    %v287 = vld [vmem:[#allocation2] sm:$0xff]
    %v288 = vld [vmem:[#allocation2 + $0x8] sm:$0xff]
    %v289 = vld [vmem:[#allocation2 + $0x10] sm:$0xff]
    %v290 = vld [vmem:[#allocation2 + $0x18] sm:$0xff]
    %v291 = vld [vmem:[#allocation2 + $0x20] sm:$0xff]
    %v292 = vld [vmem:[#allocation2 + $0x28] sm:$0xff]
    %v293 = vld [vmem:[#allocation2 + $0x30] sm:$0xff]
    %v294 = vld [vmem:[#allocation2 + $0x38] sm:$0xff]
    %v295 = vpack.c.bf16 %v287, %v287
    %v296 = vpack.c.bf16 %v288, %v288
    %v297 = vpack.c.bf16 %v289, %v289
    %v298 = vpack.c.bf16 %v290, %v290
    %v299 = vpack.c.bf16 %v291, %v291
    %v300 = vpack.c.bf16 %v292, %v292
    %v301 = vpack.c.bf16 %v293, %v293
    %v302 = vpack.c.bf16 %v294, %v294
    %303 = vst [vmem:[%s2] sm:$0xf] %v295
    %304 = vst [vmem:[%s2 + $0x4] sm:$0xf] %v296
    %305 = vst [vmem:[%s2 + $0x8] sm:$0xf] %v297
    %306 = vst [vmem:[%s2 + $0xc] sm:$0xf] %v298
    %307 = vst [vmem:[%s2 + $0x10] sm:$0xf] %v299
    %308 = vst [vmem:[%s2 + $0x14] sm:$0xf] %v300
    %309 = vst [vmem:[%s2 + $0x18] sm:$0xf] %v301
    %310 = vst [vmem:[%s2 + $0x1c] sm:$0xf] %v302
    %v311 = vadd.f32 %v287, %v288
    %v312 = vadd.f32 %v311, %v289
    %v313 = vadd.f32 %v312, %v290
    %v314 = vadd.f32 %v313, %v291
    %v315 = vadd.f32 %v314, %v292
    %v316 = vadd.f32 %v315, %v293
    %v317 = vadd.f32 %v316, %v294
    %v318 = vrot.slane %v317, 4
    %v319 = vadd.f32 %v317, %v318
    %v320 = vrot.slane %v319, 2
    %v321 = vadd.f32 %v319, %v320
    %v322 = vrot.slane %v321, 1
    %v323 = vadd.f32 %v321, %v322
    %324 = vst [vmem:[%s3] sm:$0x1] %v323
    %v325 = vmul.f32 %v287, %v287
    %v326 = vmul.f32 %v288, %v288
    %v327 = vmul.f32 %v289, %v289
    %v328 = vmul.f32 %v290, %v290
    %v329 = vmul.f32 %v291, %v291
    %v330 = vmul.f32 %v292, %v292
    %v331 = vmul.f32 %v293, %v293
    %v332 = vmul.f32 %v294, %v294
    %v333 = vadd.f32 %v325, %v326
    %v334 = vadd.f32 %v333, %v327
    %v335 = vadd.f32 %v334, %v328
    %v336 = vadd.f32 %v335, %v329
    %v337 = vadd.f32 %v336, %v330
    %v338 = vadd.f32 %v337, %v331
    %v339 = vadd.f32 %v338, %v332
    %v340 = vrot.slane %v339, 4
    %v341 = vadd.f32 %v339, %v340
    %v342 = vrot.slane %v341, 2
    %v343 = vadd.f32 %v341, %v342
    %v344 = vrot.slane %v343, 1
    %v345 = vadd.f32 %v343, %v344
    %346 = vst [vmem:[%s4] sm:$0x1] %v345
  $region17: #{discriminator_forward.8} parent=0 // pred_fallthru
    _
  // Predicated region
  $region18: #{discriminator_forward.8} parent=0 // pred_check
    _
  $region19: #{discriminator_forward.8} parent=0 // pred_check_branch
    %348 = sbr.rel (0) target = $region21
  $region20: #{discriminator_forward.8} parent=0 // pred_region
    _
  $region21: #{discriminator_forward.8} parent=0 // pred_fallthru
    _
  // Predicated region
  $region22: #{discriminator_forward.8} parent=0 // pred_check
    _
  $region23: #{discriminator_forward.8} parent=0 // pred_check_branch
    %350 = sbr.rel (0) target = $region25
  $region24: #{discriminator_forward.8} parent=0 // pred_region
    _
  $region25: #{discriminator_forward.8} parent=0 // pred_fallthru
    _
  // Predicated region
  $region26: #{discriminator_forward.8} parent=0 // pred_check
    _
  $region27: #{discriminator_forward.8} parent=0 // pred_check_branch
    %352 = sbr.rel (0) target = $region29
  $region28: #{discriminator_forward.8} parent=0 // pred_region
    _
  $region29: #{discriminator_forward.8} parent=0 // pred_fallthru
    _
  // Predicated region
  $region30: #{discriminator_forward.8} parent=0 // pred_check
    _
  $region31: #{discriminator_forward.8} parent=0 // pred_check_branch
    %354 = sbr.rel (0) target = $region33
  $region32: #{discriminator_forward.8} parent=0 // pred_region
    _
  $region33: #{discriminator_forward.8} parent=0 // pred_fallthru
    _
  // Predicated region
  $region34: #{discriminator_forward.8} parent=0 // pred_check
    _
  $region35: #{discriminator_forward.8} parent=0 // pred_check_branch
    %356 = sbr.rel (0) target = $region37
  $region36: #{discriminator_forward.8} parent=0 // pred_region
    _
  $region37: #{discriminator_forward.8} parent=0 // pred_fallthru
    _
  // Predicated region
  $region38: #{discriminator_forward.8} parent=0 // pred_check
    _
  $region39: #{discriminator_forward.8} parent=0 // pred_check_branch
    %358 = sbr.rel (0) target = $region41
  $region40: #{discriminator_forward.8} parent=0 // pred_region
    _
  $region41: #{discriminator_forward.8} parent=0 // pred_fallthru
    _

// kernel: discriminator_forward.9
$region0: #{discriminator_forward.9}
  #allocation0 [shape = 'u32[]', space=smem, size = 0x4, offset = 0x4, fixed_abs, tag = 'smem constant byte address 0x4 - core index']
  #allocation1 [shape = 'u32[72,128]{1,0:T(1,128)}', space=vmem, size = 0x9000, scoped, tag = 'internal scratch']
  %s0 = inlined_call_operand.vmem [shape: bf16[64,128], index: 0, kind: input, shape index: {}]
  %s1 = inlined_call_operand.vmem [shape: f32[1,128], index: 1, kind: input, shape index: {}]
  %s2 = inlined_call_operand.vmem [shape: f32[1,128], index: 2, kind: input, shape index: {}]
  %s3 = inlined_call_operand.vmem [shape: bf16[64,128], index: 3, kind: output, shape index: {}]
  %s4 = sld [smem:[#allocation0]]
  $region22: #{discriminator_forward.9} parent=0
    _
  %s6 = ssub.s32 1, %s4
  %s7 = scalar_select 0, %s6, %s4
  // Predicated region
  $region2: #{discriminator_forward.9} parent=0 // pred_check
    _
  $region3: #{discriminator_forward.9} parent=0 // pred_check_branch
    %9 = sbr.rel (0) target = $region5
  $region4: #{discriminator_forward.9} parent=0 // pred_region
    _
  $region5: #{discriminator_forward.9} parent=0 // pred_fallthru
    _
  // Predicated region
  $region6: #{discriminator_forward.9} parent=0 // pred_check
    _
  $region7: #{discriminator_forward.9} parent=0 // pred_check_branch
    %11 = sbr.rel (0) target = $region9
  $region8: #{discriminator_forward.9} parent=0 // pred_region
    _
  $region9: #{discriminator_forward.9} parent=0 // pred_fallthru
    _
  // Predicated region
  $region10: #{discriminator_forward.9} parent=0 // pred_check
    _
  $region11: #{discriminator_forward.9} parent=0 // pred_check_branch
    %13 = sbr.rel (0) target = $region13
  $region12: #{discriminator_forward.9} parent=0 // pred_region
    _
  $region13: #{discriminator_forward.9} parent=0 // pred_fallthru
    _
  %v14 = vld [vmem:[%s0] sm:$0xf]
  %v15 = vld [vmem:[%s0 + $0x4] sm:$0xf]
  %v16 = vld [vmem:[%s0 + $0x8] sm:$0xf]
  %v17 = vld [vmem:[%s0 + $0xc] sm:$0xf]
  %v18 = vld [vmem:[%s0 + $0x10] sm:$0xf]
  %v19 = vld [vmem:[%s0 + $0x14] sm:$0xf]
  %v20 = vld [vmem:[%s0 + $0x18] sm:$0xf]
  %v21 = vld [vmem:[%s0 + $0x1c] sm:$0xf]
  %v22 = vunpack.c.l.bf16 %v14
  %v23 = vunpack.c.l.bf16 %v15
  %v24 = vunpack.c.l.bf16 %v16
  %v25 = vunpack.c.l.bf16 %v17
  %v26 = vunpack.c.l.bf16 %v18
  %v27 = vunpack.c.l.bf16 %v19
  %v28 = vunpack.c.l.bf16 %v20
  %v29 = vunpack.c.l.bf16 %v21
  %v30 = vld [vmem:[%s1] sm:$0x1]
  %v32 = vperm.slane %v30, 0
  %v34 = vmul.f32 %v22, %v32
  %v35 = vmul.f32 %v23, %v32
  %v36 = vmul.f32 %v24, %v32
  %v37 = vmul.f32 %v25, %v32
  %v38 = vmul.f32 %v26, %v32
  %v39 = vmul.f32 %v27, %v32
  %v40 = vmul.f32 %v28, %v32
  %v41 = vmul.f32 %v29, %v32
  %v42 = vld [vmem:[%s2] sm:$0x1]
  %v44 = vperm.slane %v42, 0
  %v46 = vadd.f32 %v34, %v44
  %v47 = vadd.f32 %v35, %v44
  %v48 = vadd.f32 %v36, %v44
  %v49 = vadd.f32 %v37, %v44
  %v50 = vadd.f32 %v38, %v44
  %v51 = vadd.f32 %v39, %v44
  %v52 = vadd.f32 %v40, %v44
  %v53 = vadd.f32 %v41, %v44
  %v54 = vmul.f32 %v46, 0.2
  %v55 = vmul.f32 %v47, 0.2
  %v56 = vmul.f32 %v48, 0.2
  %v57 = vmul.f32 %v49, 0.2
  %v58 = vmul.f32 %v50, 0.2
  %v59 = vmul.f32 %v51, 0.2
  %v60 = vmul.f32 %v52, 0.2
  %v61 = vmul.f32 %v53, 0.2
  %v62 = vmax.f32 %v46, %v54
  %v63 = vmax.f32 %v47, %v55
  %v64 = vmax.f32 %v48, %v56
  %v65 = vmax.f32 %v49, %v57
  %v66 = vmax.f32 %v50, %v58
  %v67 = vmax.f32 %v51, %v59
  %v68 = vmax.f32 %v52, %v60
  %v69 = vmax.f32 %v53, %v61
  %v70 = vpack.c.bf16 %v62, %v62
  %v71 = vpack.c.bf16 %v63, %v63
  %v72 = vpack.c.bf16 %v64, %v64
  %v73 = vpack.c.bf16 %v65, %v65
  %v74 = vpack.c.bf16 %v66, %v66
  %v75 = vpack.c.bf16 %v67, %v67
  %v76 = vpack.c.bf16 %v68, %v68
  %v77 = vpack.c.bf16 %v69, %v69
  %78 = vst [vmem:[%s3] sm:$0xf] %v70
  %79 = vst [vmem:[%s3 + $0x4] sm:$0xf] %v71
  %80 = vst [vmem:[%s3 + $0x8] sm:$0xf] %v72
  %81 = vst [vmem:[%s3 + $0xc] sm:$0xf] %v73
  %82 = vst [vmem:[%s3 + $0x10] sm:$0xf] %v74
  %83 = vst [vmem:[%s3 + $0x14] sm:$0xf] %v75
  %84 = vst [vmem:[%s3 + $0x18] sm:$0xf] %v76
  %85 = vst [vmem:[%s3 + $0x1c] sm:$0xf] %v77
  // Predicated region
  $region14: #{discriminator_forward.9} parent=0 // pred_check
    _
  $region15: #{discriminator_forward.9} parent=0 // pred_check_branch
    %87 = sbr.rel (0) target = $region17
  $region16: #{discriminator_forward.9} parent=0 // pred_region
    _
  $region17: #{discriminator_forward.9} parent=0 // pred_fallthru
    _
  // Predicated region
  $region18: #{discriminator_forward.9} parent=0 // pred_check
    _
  $region19: #{discriminator_forward.9} parent=0 // pred_check_branch
    %89 = sbr.rel (0) target = $region21
  $region20: #{discriminator_forward.9} parent=0 // pred_region
    _
  $region21: #{discriminator_forward.9} parent=0 // pred_fallthru
    _

// kernel: discriminator_forward.11
$region0: #{discriminator_forward.11}
  #allocation0 [shape = 'u32[]', space=smem, size = 0x4, offset = 0x4, fixed_abs, tag = 'smem constant byte address 0x4 - core index']
  #allocation1 [shape = 'u32[72,128]{1,0:T(1,128)}', space=vmem, size = 0x9000, scoped, tag = 'internal scratch']
  %s0 = inlined_call_operand.vmem [shape: bf16[32,128], index: 0, kind: input, shape index: {}]
  %s1 = inlined_call_operand.vmem [shape: f32[1,128], index: 1, kind: input, shape index: {}]
  %s2 = inlined_call_operand.vmem [shape: f32[1,128], index: 2, kind: input, shape index: {}]
  %s3 = inlined_call_operand.vmem [shape: bf16[32,128], index: 3, kind: output, shape index: {}]
  %s4 = sld [smem:[#allocation0]]
  $region22: #{discriminator_forward.11} parent=0
    _
  %s6 = ssub.s32 1, %s4
  %s7 = scalar_select 0, %s6, %s4
  // Predicated region
  $region2: #{discriminator_forward.11} parent=0 // pred_check
    _
  $region3: #{discriminator_forward.11} parent=0 // pred_check_branch
    %9 = sbr.rel (0) target = $region5
  $region4: #{discriminator_forward.11} parent=0 // pred_region
    _
  $region5: #{discriminator_forward.11} parent=0 // pred_fallthru
    _
  // Predicated region
  $region6: #{discriminator_forward.11} parent=0 // pred_check
    _
  $region7: #{discriminator_forward.11} parent=0 // pred_check_branch
    %11 = sbr.rel (0) target = $region9
  $region8: #{discriminator_forward.11} parent=0 // pred_region
    _
  $region9: #{discriminator_forward.11} parent=0 // pred_fallthru
    _
  // Predicated region
  $region10: #{discriminator_forward.11} parent=0 // pred_check
    _
  $region11: #{discriminator_forward.11} parent=0 // pred_check_branch
    %13 = sbr.rel (0) target = $region13
  $region12: #{discriminator_forward.11} parent=0 // pred_region
    _
  $region13: #{discriminator_forward.11} parent=0 // pred_fallthru
    _
  %v14 = vld [vmem:[%s0] sm:$0xf]
  %v15 = vld [vmem:[%s0 + $0x4] sm:$0xf]
  %v16 = vld [vmem:[%s0 + $0x8] sm:$0xf]
  %v17 = vld [vmem:[%s0 + $0xc] sm:$0xf]
  %v18 = vunpack.c.l.bf16 %v14
  %v19 = vunpack.c.l.bf16 %v15
  %v20 = vunpack.c.l.bf16 %v16
  %v21 = vunpack.c.l.bf16 %v17
  %v22 = vld [vmem:[%s1] sm:$0x1]
  %v24 = vperm.slane %v22, 0
  %v26 = vmul.f32 %v18, %v24
  %v27 = vmul.f32 %v19, %v24
  %v28 = vmul.f32 %v20, %v24
  %v29 = vmul.f32 %v21, %v24
  %v30 = vld [vmem:[%s2] sm:$0x1]
  %v32 = vperm.slane %v30, 0
  %v34 = vadd.f32 %v26, %v32
  %v35 = vadd.f32 %v27, %v32
  %v36 = vadd.f32 %v28, %v32
  %v37 = vadd.f32 %v29, %v32
  %v38 = vmul.f32 %v34, 0.2
  %v39 = vmul.f32 %v35, 0.2
  %v40 = vmul.f32 %v36, 0.2
  %v41 = vmul.f32 %v37, 0.2
  %v42 = vmax.f32 %v34, %v38
  %v43 = vmax.f32 %v35, %v39
  %v44 = vmax.f32 %v36, %v40
  %v45 = vmax.f32 %v37, %v41
  %v46 = vpack.c.bf16 %v42, %v42
  %v47 = vpack.c.bf16 %v43, %v43
  %v48 = vpack.c.bf16 %v44, %v44
  %v49 = vpack.c.bf16 %v45, %v45
  %50 = vst [vmem:[%s3] sm:$0xf] %v46
  %51 = vst [vmem:[%s3 + $0x4] sm:$0xf] %v47
  %52 = vst [vmem:[%s3 + $0x8] sm:$0xf] %v48
  %53 = vst [vmem:[%s3 + $0xc] sm:$0xf] %v49
  // Predicated region
  $region14: #{discriminator_forward.11} parent=0 // pred_check
    _
  $region15: #{discriminator_forward.11} parent=0 // pred_check_branch
    %55 = sbr.rel (0) target = $region17
  $region16: #{discriminator_forward.11} parent=0 // pred_region
    _
  $region17: #{discriminator_forward.11} parent=0 // pred_fallthru
    _
  // Predicated region
  $region18: #{discriminator_forward.11} parent=0 // pred_check
    _
  $region19: #{discriminator_forward.11} parent=0 // pred_check_branch
    %57 = sbr.rel (0) target = $region21
  $region20: #{discriminator_forward.11} parent=0 // pred_region
    _
  $region21: #{discriminator_forward.11} parent=0 // pred_fallthru
    _

// kernel: discriminator_forward.10
$region0: #{discriminator_forward.10}
  #allocation0 [shape = 'u32[]', space=smem, size = 0x4, offset = 0x4, fixed_abs, tag = 'smem constant byte address 0x4 - core index']
  #allocation1 [shape = 'u32[72,128]{1,0:T(1,128)}', space=vmem, size = 0x9000, scoped, tag = 'internal scratch']
  #allocation2 [shape = 'f32[32,128]{1,0:T(8,128)}', space=vmem, size = 0x4000, scoped, tag = 'scratch operand']
  %s0 = inlined_call_operand.vmem [shape: bf16[32,512], index: 0, kind: input, shape index: {}]
  %s1 = inlined_call_operand.vmem [shape: bf16[512,128], index: 1, kind: input, shape index: {}]
  %s2 = inlined_call_operand.vmem [shape: bf16[32,128], index: 2, kind: output, shape index: {0}]
  %s3 = inlined_call_operand.vmem [shape: f32[1,1,128], index: 3, kind: output, shape index: {1}]
  %s4 = inlined_call_operand.vmem [shape: f32[1,1,128], index: 4, kind: output, shape index: {2}]
  %5 = xla_tuple %s2, %s3, %s4
  %s6 = sld [smem:[#allocation0]]
  $region42: #{discriminator_forward.10} parent=0
    _
  %s8 = ssub.s32 1, %s6
  %s9 = scalar_select 0, %s8, %s6
  // Predicated region
  $region2: #{discriminator_forward.10} parent=0 // pred_check
    _
  $region3: #{discriminator_forward.10} parent=0 // pred_check_branch
    %11 = sbr.rel (0) target = $region5
  $region4: #{discriminator_forward.10} parent=0 // pred_region
    _
  $region5: #{discriminator_forward.10} parent=0 // pred_fallthru
    _
  // Predicated region
  $region6: #{discriminator_forward.10} parent=0 // pred_check
    _
  $region7: #{discriminator_forward.10} parent=0 // pred_check_branch
    %13 = sbr.rel (0) target = $region9
  $region8: #{discriminator_forward.10} parent=0 // pred_region
    _
  $region9: #{discriminator_forward.10} parent=0 // pred_fallthru
    _
  %p14 = scmp.eq.s32.totalorder 0, 0
  // Predicated region
  $region10: #{discriminator_forward.10} parent=0 // pred_check
    %p15 = pneg %p14
  $region11: #{discriminator_forward.10} parent=0 // pred_check_branch
    %17 = sbr.rel (%p15) target = $region13
  $region12: #{discriminator_forward.10} parent=0 // pred_region
    %18 = vst [vmem:[#allocation2] sm:$0xff] 0.0
    %19 = vst [vmem:[#allocation2 + $0x8] sm:$0xff] 0.0
    %20 = vst [vmem:[#allocation2 + $0x10] sm:$0xff] 0.0
    %21 = vst [vmem:[#allocation2 + $0x18] sm:$0xff] 0.0
  $region13: #{discriminator_forward.10} parent=0 // pred_fallthru
    _
  %v22 = vld [vmem:[#allocation2] sm:$0xff]
  %v23 = vld [vmem:[#allocation2 + $0x8] sm:$0xff]
  %v24 = vld [vmem:[#allocation2 + $0x10] sm:$0xff]
  %v25 = vld [vmem:[#allocation2 + $0x18] sm:$0xff]
  %v26 = vld [vmem:[%s0] sm:$0xff]
  %v27 = vld [vmem:[%s0 + $0x8] sm:$0xff]
  %v28 = vld [vmem:[%s0 + $0x10] sm:$0xff]
  %v29 = vld [vmem:[%s0 + $0x18] sm:$0xff]
  %v30 = vld [vmem:[%s0 + $0x20] sm:$0xff]
  %v31 = vld [vmem:[%s0 + $0x28] sm:$0xff]
  %v32 = vld [vmem:[%s0 + $0x30] sm:$0xff]
  %v33 = vld [vmem:[%s0 + $0x38] sm:$0xff]
  %v34 = vld [vmem:[%s1] sm:$0xf]
  %v35 = vld [vmem:[%s1 + $0x4] sm:$0xf]
  %v36 = vld [vmem:[%s1 + $0x8] sm:$0xf]
  %v37 = vld [vmem:[%s1 + $0xc] sm:$0xf]
  %v38 = vld [vmem:[%s1 + $0x10] sm:$0xf]
  %v39 = vld [vmem:[%s1 + $0x14] sm:$0xf]
  %v40 = vld [vmem:[%s1 + $0x18] sm:$0xf]
  %v41 = vld [vmem:[%s1 + $0x1c] sm:$0xf]
  %v42 = vld [vmem:[%s1 + $0x20] sm:$0xf]
  %v43 = vld [vmem:[%s1 + $0x24] sm:$0xf]
  %v44 = vld [vmem:[%s1 + $0x28] sm:$0xf]
  %v45 = vld [vmem:[%s1 + $0x2c] sm:$0xf]
  %v46 = vld [vmem:[%s1 + $0x30] sm:$0xf]
  %v47 = vld [vmem:[%s1 + $0x34] sm:$0xf]
  %v48 = vld [vmem:[%s1 + $0x38] sm:$0xf]
  %v49 = vld [vmem:[%s1 + $0x3c] sm:$0xf]
  %v50 = vld [vmem:[%s1 + $0x40] sm:$0xf]
  %v51 = vld [vmem:[%s1 + $0x44] sm:$0xf]
  %v52 = vld [vmem:[%s1 + $0x48] sm:$0xf]
  %v53 = vld [vmem:[%s1 + $0x4c] sm:$0xf]
  %v54 = vld [vmem:[%s1 + $0x50] sm:$0xf]
  %v55 = vld [vmem:[%s1 + $0x54] sm:$0xf]
  %v56 = vld [vmem:[%s1 + $0x58] sm:$0xf]
  %v57 = vld [vmem:[%s1 + $0x5c] sm:$0xf]
  %v58 = vld [vmem:[%s1 + $0x60] sm:$0xf]
  %v59 = vld [vmem:[%s1 + $0x64] sm:$0xf]
  %v60 = vld [vmem:[%s1 + $0x68] sm:$0xf]
  %v61 = vld [vmem:[%s1 + $0x6c] sm:$0xf]
  %v62 = vld [vmem:[%s1 + $0x70] sm:$0xf]
  %v63 = vld [vmem:[%s1 + $0x74] sm:$0xf]
  %v64 = vld [vmem:[%s1 + $0x78] sm:$0xf]
  %v65 = vld [vmem:[%s1 + $0x7c] sm:$0xf]
  %v66 = vld [vmem:[%s1 + $0x80] sm:$0xf]
  %v67 = vld [vmem:[%s1 + $0x84] sm:$0xf]
  %v68 = vld [vmem:[%s1 + $0x88] sm:$0xf]
  %v69 = vld [vmem:[%s1 + $0x8c] sm:$0xf]
  %v70 = vld [vmem:[%s1 + $0x90] sm:$0xf]
  %v71 = vld [vmem:[%s1 + $0x94] sm:$0xf]
  %v72 = vld [vmem:[%s1 + $0x98] sm:$0xf]
  %v73 = vld [vmem:[%s1 + $0x9c] sm:$0xf]
  %v74 = vld [vmem:[%s1 + $0xa0] sm:$0xf]
  %v75 = vld [vmem:[%s1 + $0xa4] sm:$0xf]
  %v76 = vld [vmem:[%s1 + $0xa8] sm:$0xf]
  %v77 = vld [vmem:[%s1 + $0xac] sm:$0xf]
  %v78 = vld [vmem:[%s1 + $0xb0] sm:$0xf]
  %v79 = vld [vmem:[%s1 + $0xb4] sm:$0xf]
  %v80 = vld [vmem:[%s1 + $0xb8] sm:$0xf]
  %v81 = vld [vmem:[%s1 + $0xbc] sm:$0xf]
  %v82 = vld [vmem:[%s1 + $0xc0] sm:$0xf]
  %v83 = vld [vmem:[%s1 + $0xc4] sm:$0xf]
  %v84 = vld [vmem:[%s1 + $0xc8] sm:$0xf]
  %v85 = vld [vmem:[%s1 + $0xcc] sm:$0xf]
  %v86 = vld [vmem:[%s1 + $0xd0] sm:$0xf]
  %v87 = vld [vmem:[%s1 + $0xd4] sm:$0xf]
  %v88 = vld [vmem:[%s1 + $0xd8] sm:$0xf]
  %v89 = vld [vmem:[%s1 + $0xdc] sm:$0xf]
  %v90 = vld [vmem:[%s1 + $0xe0] sm:$0xf]
  %v91 = vld [vmem:[%s1 + $0xe4] sm:$0xf]
  %v92 = vld [vmem:[%s1 + $0xe8] sm:$0xf]
  %v93 = vld [vmem:[%s1 + $0xec] sm:$0xf]
  %v94 = vld [vmem:[%s1 + $0xf0] sm:$0xf]
  %v95 = vld [vmem:[%s1 + $0xf4] sm:$0xf]
  %v96 = vld [vmem:[%s1 + $0xf8] sm:$0xf]
  %v97 = vld [vmem:[%s1 + $0xfc] sm:$0xf]
  %v106 = vunpack.c.l.b16 %v26
  %v107 = vunpack.c.h.b16 %v26
  %v108 = vunpack.c.l.b16 %v27
  %v109 = vunpack.c.h.b16 %v27
  %v110 = vunpack.c.l.b16 %v28
  %v111 = vunpack.c.h.b16 %v28
  %v112 = vunpack.c.l.b16 %v29
  %v113 = vunpack.c.h.b16 %v29
  %v114 = vunpack.c.l.b16 %v30
  %v115 = vunpack.c.h.b16 %v30
  %v116 = vunpack.c.l.b16 %v31
  %v117 = vunpack.c.h.b16 %v31
  %v118 = vunpack.c.l.b16 %v32
  %v119 = vunpack.c.h.b16 %v32
  %v120 = vunpack.c.l.b16 %v33
  %v121 = vunpack.c.h.b16 %v33
  %v122 = vpack.c.b16 %v110, %v106
  %v123 = vpack.c.b16 %v111, %v107
  %v124 = vpack.c.b16 %v112, %v108
  %v125 = vpack.c.b16 %v113, %v109
  %v126 = vpack.c.b16 %v118, %v114
  %v127 = vpack.c.b16 %v119, %v115
  %v128 = vpack.c.b16 %v120, %v116
  %v129 = vpack.c.b16 %v121, %v117
  %v202 = vunpack.c.l.b16 %v34
  %v203 = vunpack.c.l.b16 %v35
  %v204 = vunpack.c.l.b16 %v36
  %v205 = vunpack.c.l.b16 %v37
  %v206 = vunpack.c.l.b16 %v38
  %v207 = vunpack.c.l.b16 %v39
  %v208 = vunpack.c.l.b16 %v40
  %v209 = vunpack.c.l.b16 %v41
  %v210 = vunpack.c.l.b16 %v42
  %v211 = vunpack.c.l.b16 %v43
  %v212 = vunpack.c.l.b16 %v44
  %v213 = vunpack.c.l.b16 %v45
  %v214 = vunpack.c.l.b16 %v46
  %v215 = vunpack.c.l.b16 %v47
  %v216 = vunpack.c.l.b16 %v48
  %v217 = vunpack.c.l.b16 %v49
  %v218 = vunpack.c.l.b16 %v50
  %v219 = vunpack.c.l.b16 %v51
  %v220 = vunpack.c.l.b16 %v52
  %v221 = vunpack.c.l.b16 %v53
  %v222 = vunpack.c.l.b16 %v54
  %v223 = vunpack.c.l.b16 %v55
  %v224 = vunpack.c.l.b16 %v56
  %v225 = vunpack.c.l.b16 %v57
  %v226 = vunpack.c.l.b16 %v58
  %v227 = vunpack.c.l.b16 %v59
  %v228 = vunpack.c.l.b16 %v60
  %v229 = vunpack.c.l.b16 %v61
  %v230 = vunpack.c.l.b16 %v62
  %v231 = vunpack.c.l.b16 %v63
  %v232 = vunpack.c.l.b16 %v64
  %v233 = vunpack.c.l.b16 %v65
  %v234 = vunpack.c.l.b16 %v66
  %v235 = vunpack.c.l.b16 %v67
  %v236 = vunpack.c.l.b16 %v68
  %v237 = vunpack.c.l.b16 %v69
  %v238 = vunpack.c.l.b16 %v70
  %v239 = vunpack.c.l.b16 %v71
  %v240 = vunpack.c.l.b16 %v72
  %v241 = vunpack.c.l.b16 %v73
  %v242 = vunpack.c.l.b16 %v74
  %v243 = vunpack.c.l.b16 %v75
  %v244 = vunpack.c.l.b16 %v76
  %v245 = vunpack.c.l.b16 %v77
  %v246 = vunpack.c.l.b16 %v78
  %v247 = vunpack.c.l.b16 %v79
  %v248 = vunpack.c.l.b16 %v80
  %v249 = vunpack.c.l.b16 %v81
  %v250 = vunpack.c.l.b16 %v82
  %v251 = vunpack.c.l.b16 %v83
  %v252 = vunpack.c.l.b16 %v84
  %v253 = vunpack.c.l.b16 %v85
  %v254 = vunpack.c.l.b16 %v86
  %v255 = vunpack.c.l.b16 %v87
  %v256 = vunpack.c.l.b16 %v88
  %v257 = vunpack.c.l.b16 %v89
  %v258 = vunpack.c.l.b16 %v90
  %v259 = vunpack.c.l.b16 %v91
  %v260 = vunpack.c.l.b16 %v92
  %v261 = vunpack.c.l.b16 %v93
  %v262 = vunpack.c.l.b16 %v94
  %v263 = vunpack.c.l.b16 %v95
  %v264 = vunpack.c.l.b16 %v96
  %v265 = vunpack.c.l.b16 %v97
  %v266 = vpack.c.b16 %v203, %v202
  %v267 = vpack.c.b16 %v205, %v204
  %v268 = vpack.c.b16 %v207, %v206
  %v269 = vpack.c.b16 %v209, %v208
  %v270 = vpack.c.b16 %v211, %v210
  %v271 = vpack.c.b16 %v213, %v212
  %v272 = vpack.c.b16 %v215, %v214
  %v273 = vpack.c.b16 %v217, %v216
  %v274 = vpack.c.b16 %v219, %v218
  %v275 = vpack.c.b16 %v221, %v220
  %v276 = vpack.c.b16 %v223, %v222
  %v277 = vpack.c.b16 %v225, %v224
  %v278 = vpack.c.b16 %v227, %v226
  %v279 = vpack.c.b16 %v229, %v228
  %v280 = vpack.c.b16 %v231, %v230
  %v281 = vpack.c.b16 %v233, %v232
  %v282 = vpack.c.b16 %v235, %v234
  %v283 = vpack.c.b16 %v237, %v236
  %v284 = vpack.c.b16 %v239, %v238
  %v285 = vpack.c.b16 %v241, %v240
  %v286 = vpack.c.b16 %v243, %v242
  %v287 = vpack.c.b16 %v245, %v244
  %v288 = vpack.c.b16 %v247, %v246
  %v289 = vpack.c.b16 %v249, %v248
  %v290 = vpack.c.b16 %v251, %v250
  %v291 = vpack.c.b16 %v253, %v252
  %v292 = vpack.c.b16 %v255, %v254
  %v293 = vpack.c.b16 %v257, %v256
  %v294 = vpack.c.b16 %v259, %v258
  %v295 = vpack.c.b16 %v261, %v260
  %v296 = vpack.c.b16 %v263, %v262
  %v297 = vpack.c.b16 %v265, %v264
  %330 = vmatpush.bf16.msra.mxu0 %v273
  %331 = vmatpush.bf16.msra.mxu0 %v272
  %332 = vmatpush.bf16.msra.mxu0 %v271
  %333 = vmatpush.bf16.msra.mxu0 %v270
  %334 = vmatpush.bf16.msra.mxu0 %v269
  %335 = vmatpush.bf16.msra.mxu0 %v268
  %336 = vmatpush.bf16.msra.mxu0 %v267
  %337 = vmatpush.bf16.msra.mxu0 %v266
  %338 = vmatmul.bf16.gmra.mxu0 %v122
  %v339 = vpop.f32.mrf.mxu0
  %v340 = vadd.f32 0.0, %v339
  %v341 = vpop.f32.mrf.mxu0
  %v342 = vadd.f32 0.0, %v341
  %343 = vmatmul.bf16.gmra.mxu0 %v126
  %v344 = vpop.f32.mrf.mxu0
  %v345 = vadd.f32 0.0, %v344
  %v346 = vpop.f32.mrf.mxu0
  %v347 = vadd.f32 0.0, %v346
  %348 = vdwg.mxu0
  %349 = vmatpush.bf16.msra.mxu0 %v281
  %350 = vmatpush.bf16.msra.mxu0 %v280
  %351 = vmatpush.bf16.msra.mxu0 %v279
  %352 = vmatpush.bf16.msra.mxu0 %v278
  %353 = vmatpush.bf16.msra.mxu0 %v277
  %354 = vmatpush.bf16.msra.mxu0 %v276
  %355 = vmatpush.bf16.msra.mxu0 %v275
  %356 = vmatpush.bf16.msra.mxu0 %v274
  %357 = vmatmul.bf16.gmra.mxu0 %v123
  %v358 = vpop.f32.mrf.mxu0
  %v359 = vadd.f32 %v340, %v358
  %v360 = vpop.f32.mrf.mxu0
  %v361 = vadd.f32 %v342, %v360
  %362 = vmatmul.bf16.gmra.mxu0 %v127
  %v363 = vpop.f32.mrf.mxu0
  %v364 = vadd.f32 %v345, %v363
  %v365 = vpop.f32.mrf.mxu0
  %v366 = vadd.f32 %v347, %v365
  %367 = vdwg.mxu0
  %368 = vmatpush.bf16.msra.mxu0 %v289
  %369 = vmatpush.bf16.msra.mxu0 %v288
  %370 = vmatpush.bf16.msra.mxu0 %v287
  %371 = vmatpush.bf16.msra.mxu0 %v286
  %372 = vmatpush.bf16.msra.mxu0 %v285
  %373 = vmatpush.bf16.msra.mxu0 %v284
  %374 = vmatpush.bf16.msra.mxu0 %v283
  %375 = vmatpush.bf16.msra.mxu0 %v282
  %376 = vmatmul.bf16.gmra.mxu0 %v124
  %v377 = vpop.f32.mrf.mxu0
  %v378 = vadd.f32 %v359, %v377
  %v379 = vpop.f32.mrf.mxu0
  %v380 = vadd.f32 %v361, %v379
  %381 = vmatmul.bf16.gmra.mxu0 %v128
  %v382 = vpop.f32.mrf.mxu0
  %v383 = vadd.f32 %v364, %v382
  %v384 = vpop.f32.mrf.mxu0
  %v385 = vadd.f32 %v366, %v384
  %386 = vdwg.mxu0
  %387 = vmatpush.bf16.msra.mxu0 %v297
  %388 = vmatpush.bf16.msra.mxu0 %v296
  %389 = vmatpush.bf16.msra.mxu0 %v295
  %390 = vmatpush.bf16.msra.mxu0 %v294
  %391 = vmatpush.bf16.msra.mxu0 %v293
  %392 = vmatpush.bf16.msra.mxu0 %v292
  %393 = vmatpush.bf16.msra.mxu0 %v291
  %394 = vmatpush.bf16.msra.mxu0 %v290
  %395 = vmatmul.bf16.gmra.mxu0 %v125
  %v396 = vpop.f32.mrf.mxu0
  %v397 = vadd.f32 %v378, %v396
  %v398 = vpop.f32.mrf.mxu0
  %v399 = vadd.f32 %v380, %v398
  %400 = vmatmul.bf16.gmra.mxu0 %v129
  %v401 = vpop.f32.mrf.mxu0
  %v402 = vadd.f32 %v383, %v401
  %v403 = vpop.f32.mrf.mxu0
  %v404 = vadd.f32 %v385, %v403
  %405 = vdwg.mxu0
  %v406 = vadd.f32 %v22, %v397
  %v407 = vadd.f32 %v23, %v399
  %v408 = vadd.f32 %v24, %v402
  %v409 = vadd.f32 %v25, %v404
  %410 = vst [vmem:[#allocation2] sm:$0xff] %v406
  %411 = vst [vmem:[#allocation2 + $0x8] sm:$0xff] %v407
  %412 = vst [vmem:[#allocation2 + $0x10] sm:$0xff] %v408
  %413 = vst [vmem:[#allocation2 + $0x18] sm:$0xff] %v409
  // Predicated region
  $region14: #{discriminator_forward.10} parent=0 // pred_check
    %p414 = pneg %p14
  $region15: #{discriminator_forward.10} parent=0 // pred_check_branch
    %416 = sbr.rel (%p414) target = $region17
  $region16: #{discriminator_forward.10} parent=0 // pred_region
    %v417 = vld [vmem:[#allocation2] sm:$0xff]
    %v418 = vld [vmem:[#allocation2 + $0x8] sm:$0xff]
    %v419 = vld [vmem:[#allocation2 + $0x10] sm:$0xff]
    %v420 = vld [vmem:[#allocation2 + $0x18] sm:$0xff]
    %v421 = vpack.c.bf16 %v417, %v417
    %v422 = vpack.c.bf16 %v418, %v418
    %v423 = vpack.c.bf16 %v419, %v419
    %v424 = vpack.c.bf16 %v420, %v420
    %425 = vst [vmem:[%s2] sm:$0xf] %v421
    %426 = vst [vmem:[%s2 + $0x4] sm:$0xf] %v422
    %427 = vst [vmem:[%s2 + $0x8] sm:$0xf] %v423
    %428 = vst [vmem:[%s2 + $0xc] sm:$0xf] %v424
    %v429 = vadd.f32 %v417, %v418
    %v430 = vadd.f32 %v429, %v419
    %v431 = vadd.f32 %v430, %v420
    %v432 = vrot.slane %v431, 4
    %v433 = vadd.f32 %v431, %v432
    %v434 = vrot.slane %v433, 2
    %v435 = vadd.f32 %v433, %v434
    %v436 = vrot.slane %v435, 1
    %v437 = vadd.f32 %v435, %v436
    %438 = vst [vmem:[%s3] sm:$0x1] %v437
    %v439 = vmul.f32 %v417, %v417
    %v440 = vmul.f32 %v418, %v418
    %v441 = vmul.f32 %v419, %v419
    %v442 = vmul.f32 %v420, %v420
    %v443 = vadd.f32 %v439, %v440
    %v444 = vadd.f32 %v443, %v441
    %v445 = vadd.f32 %v444, %v442
    %v446 = vrot.slane %v445, 4
    %v447 = vadd.f32 %v445, %v446
    %v448 = vrot.slane %v447, 2
    %v449 = vadd.f32 %v447, %v448
    %v450 = vrot.slane %v449, 1
    %v451 = vadd.f32 %v449, %v450
    %452 = vst [vmem:[%s4] sm:$0x1] %v451
  $region17: #{discriminator_forward.10} parent=0 // pred_fallthru
    _
  // Predicated region
  $region18: #{discriminator_forward.10} parent=0 // pred_check
    _
  $region19: #{discriminator_forward.10} parent=0 // pred_check_branch
    %454 = sbr.rel (0) target = $region21
  $region20: #{discriminator_forward.10} parent=0 // pred_region
    _
  $region21: #{discriminator_forward.10} parent=0 // pred_fallthru
    _
  // Predicated region
  $region22: #{discriminator_forward.10} parent=0 // pred_check
    _
  $region23: #{discriminator_forward.10} parent=0 // pred_check_branch
    %456 = sbr.rel (0) target = $region25
  $region24: #{discriminator_forward.10} parent=0 // pred_region
    _
  $region25: #{discriminator_forward.10} parent=0 // pred_fallthru
    _
  // Predicated region
  $region26: #{discriminator_forward.10} parent=0 // pred_check
    _
  $region27: #{discriminator_forward.10} parent=0 // pred_check_branch
    %458 = sbr.rel (0) target = $region29
  $region28: #{discriminator_forward.10} parent=0 // pred_region
    _
  $region29: #{discriminator_forward.10} parent=0 // pred_fallthru
    _
  // Predicated region
  $region30: #{discriminator_forward.10} parent=0 // pred_check
    _
  $region31: #{discriminator_forward.10} parent=0 // pred_check_branch
    %460 = sbr.rel (0) target = $region33
  $region32: #{discriminator_forward.10} parent=0 // pred_region
    _
  $region33: #{discriminator_forward.10} parent=0 // pred_fallthru
    _
  // Predicated region
  $region34: #{discriminator_forward.10} parent=0 // pred_check
    _
  $region35: #{discriminator_forward.10} parent=0 // pred_check_branch
    %462 = sbr.rel (0) target = $region37
  $region36: #{discriminator_forward.10} parent=0 // pred_region
    _
  $region37: #{discriminator_forward.10} parent=0 // pred_fallthru
    _
  // Predicated region
  $region38: #{discriminator_forward.10} parent=0 // pred_check
    _
  $region39: #{discriminator_forward.10} parent=0 // pred_check_branch
    %464 = sbr.rel (0) target = $region41
  $region40: #{discriminator_forward.10} parent=0 // pred_region
    _
  $region41: #{discriminator_forward.10} parent=0 // pred_fallthru
    _

// kernel: discriminator_forward.12
$region0: #{discriminator_forward.12}
  #allocation0 [shape = 'u32[]', space=smem, size = 0x4, offset = 0x4, fixed_abs, tag = 'smem constant byte address 0x4 - core index']
  #allocation1 [shape = 'u32[72,128]{1,0:T(1,128)}', space=vmem, size = 0x9000, scoped, tag = 'internal scratch']
  #allocation2 [shape = 'f32[32,128]{1,0:T(8,128)}', space=vmem, size = 0x4000, scoped, tag = 'scratch operand']
  %s0 = inlined_call_operand.vmem [shape: bf16[32,1024], index: 0, kind: input, shape index: {}]
  %s1 = inlined_call_operand.vmem [shape: bf16[1024,128], index: 1, kind: input, shape index: {}]
  %s2 = inlined_call_operand.vmem [shape: bf16[32,128], index: 2, kind: output, shape index: {0}]
  %s3 = inlined_call_operand.vmem [shape: f32[1,1,128], index: 3, kind: output, shape index: {1}]
  %s4 = inlined_call_operand.vmem [shape: f32[1,1,128], index: 4, kind: output, shape index: {2}]
  %5 = xla_tuple %s2, %s3, %s4
  %s6 = sld [smem:[#allocation0]]
  $region42: #{discriminator_forward.12} parent=0
    _
  %s8 = ssub.s32 1, %s6
  %s9 = scalar_select 0, %s8, %s6
  // Predicated region
  $region2: #{discriminator_forward.12} parent=0 // pred_check
    _
  $region3: #{discriminator_forward.12} parent=0 // pred_check_branch
    %11 = sbr.rel (0) target = $region5
  $region4: #{discriminator_forward.12} parent=0 // pred_region
    _
  $region5: #{discriminator_forward.12} parent=0 // pred_fallthru
    _
  // Predicated region
  $region6: #{discriminator_forward.12} parent=0 // pred_check
    _
  $region7: #{discriminator_forward.12} parent=0 // pred_check_branch
    %13 = sbr.rel (0) target = $region9
  $region8: #{discriminator_forward.12} parent=0 // pred_region
    _
  $region9: #{discriminator_forward.12} parent=0 // pred_fallthru
    _
  %p14 = scmp.eq.s32.totalorder 0, 0
  // Predicated region
  $region10: #{discriminator_forward.12} parent=0 // pred_check
    %p15 = pneg %p14
  $region11: #{discriminator_forward.12} parent=0 // pred_check_branch
    %17 = sbr.rel (%p15) target = $region13
  $region12: #{discriminator_forward.12} parent=0 // pred_region
    %18 = vst [vmem:[#allocation2] sm:$0xff] 0.0
    %19 = vst [vmem:[#allocation2 + $0x8] sm:$0xff] 0.0
    %20 = vst [vmem:[#allocation2 + $0x10] sm:$0xff] 0.0
    %21 = vst [vmem:[#allocation2 + $0x18] sm:$0xff] 0.0
  $region13: #{discriminator_forward.12} parent=0 // pred_fallthru
    _
  %v22 = vld [vmem:[#allocation2] sm:$0xff]
  %v23 = vld [vmem:[#allocation2 + $0x8] sm:$0xff]
  %v24 = vld [vmem:[#allocation2 + $0x10] sm:$0xff]
  %v25 = vld [vmem:[#allocation2 + $0x18] sm:$0xff]
  %v26 = vld [vmem:[%s0] sm:$0xff]
  %v27 = vld [vmem:[%s0 + $0x8] sm:$0xff]
  %v28 = vld [vmem:[%s0 + $0x10] sm:$0xff]
  %v29 = vld [vmem:[%s0 + $0x18] sm:$0xff]
  %v30 = vld [vmem:[%s0 + $0x20] sm:$0xff]
  %v31 = vld [vmem:[%s0 + $0x28] sm:$0xff]
  %v32 = vld [vmem:[%s0 + $0x30] sm:$0xff]
  %v33 = vld [vmem:[%s0 + $0x38] sm:$0xff]
  %v34 = vld [vmem:[%s0 + $0x40] sm:$0xff]
  %v35 = vld [vmem:[%s0 + $0x48] sm:$0xff]
  %v36 = vld [vmem:[%s0 + $0x50] sm:$0xff]
  %v37 = vld [vmem:[%s0 + $0x58] sm:$0xff]
  %v38 = vld [vmem:[%s0 + $0x60] sm:$0xff]
  %v39 = vld [vmem:[%s0 + $0x68] sm:$0xff]
  %v40 = vld [vmem:[%s0 + $0x70] sm:$0xff]
  %v41 = vld [vmem:[%s0 + $0x78] sm:$0xff]
  %v42 = vld [vmem:[%s1] sm:$0xf]
  %v43 = vld [vmem:[%s1 + $0x4] sm:$0xf]
  %v44 = vld [vmem:[%s1 + $0x8] sm:$0xf]
  %v45 = vld [vmem:[%s1 + $0xc] sm:$0xf]
  %v46 = vld [vmem:[%s1 + $0x10] sm:$0xf]
  %v47 = vld [vmem:[%s1 + $0x14] sm:$0xf]
  %v48 = vld [vmem:[%s1 + $0x18] sm:$0xf]
  %v49 = vld [vmem:[%s1 + $0x1c] sm:$0xf]
  %v50 = vld [vmem:[%s1 + $0x20] sm:$0xf]
  %v51 = vld [vmem:[%s1 + $0x24] sm:$0xf]
  %v52 = vld [vmem:[%s1 + $0x28] sm:$0xf]
  %v53 = vld [vmem:[%s1 + $0x2c] sm:$0xf]
  %v54 = vld [vmem:[%s1 + $0x30] sm:$0xf]
  %v55 = vld [vmem:[%s1 + $0x34] sm:$0xf]
  %v56 = vld [vmem:[%s1 + $0x38] sm:$0xf]
  %v57 = vld [vmem:[%s1 + $0x3c] sm:$0xf]
  %v58 = vld [vmem:[%s1 + $0x40] sm:$0xf]
  %v59 = vld [vmem:[%s1 + $0x44] sm:$0xf]
  %v60 = vld [vmem:[%s1 + $0x48] sm:$0xf]
  %v61 = vld [vmem:[%s1 + $0x4c] sm:$0xf]
  %v62 = vld [vmem:[%s1 + $0x50] sm:$0xf]
  %v63 = vld [vmem:[%s1 + $0x54] sm:$0xf]
  %v64 = vld [vmem:[%s1 + $0x58] sm:$0xf]
  %v65 = vld [vmem:[%s1 + $0x5c] sm:$0xf]
  %v66 = vld [vmem:[%s1 + $0x60] sm:$0xf]
  %v67 = vld [vmem:[%s1 + $0x64] sm:$0xf]
  %v68 = vld [vmem:[%s1 + $0x68] sm:$0xf]
  %v69 = vld [vmem:[%s1 + $0x6c] sm:$0xf]
  %v70 = vld [vmem:[%s1 + $0x70] sm:$0xf]
  %v71 = vld [vmem:[%s1 + $0x74] sm:$0xf]
  %v72 = vld [vmem:[%s1 + $0x78] sm:$0xf]
  %v73 = vld [vmem:[%s1 + $0x7c] sm:$0xf]
  %v74 = vld [vmem:[%s1 + $0x80] sm:$0xf]
  %v75 = vld [vmem:[%s1 + $0x84] sm:$0xf]
  %v76 = vld [vmem:[%s1 + $0x88] sm:$0xf]
  %v77 = vld [vmem:[%s1 + $0x8c] sm:$0xf]
  %v78 = vld [vmem:[%s1 + $0x90] sm:$0xf]
  %v79 = vld [vmem:[%s1 + $0x94] sm:$0xf]
  %v80 = vld [vmem:[%s1 + $0x98] sm:$0xf]
  %v81 = vld [vmem:[%s1 + $0x9c] sm:$0xf]
  %v82 = vld [vmem:[%s1 + $0xa0] sm:$0xf]
  %v83 = vld [vmem:[%s1 + $0xa4] sm:$0xf]
  %v84 = vld [vmem:[%s1 + $0xa8] sm:$0xf]
  %v85 = vld [vmem:[%s1 + $0xac] sm:$0xf]
  %v86 = vld [vmem:[%s1 + $0xb0] sm:$0xf]
  %v87 = vld [vmem:[%s1 + $0xb4] sm:$0xf]
  %v88 = vld [vmem:[%s1 + $0xb8] sm:$0xf]
  %v89 = vld [vmem:[%s1 + $0xbc] sm:$0xf]
  %v90 = vld [vmem:[%s1 + $0xc0] sm:$0xf]
  %v91 = vld [vmem:[%s1 + $0xc4] sm:$0xf]
  %v92 = vld [vmem:[%s1 + $0xc8] sm:$0xf]
  %v93 = vld [vmem:[%s1 + $0xcc] sm:$0xf]
  %v94 = vld [vmem:[%s1 + $0xd0] sm:$0xf]
  %v95 = vld [vmem:[%s1 + $0xd4] sm:$0xf]
  %v96 = vld [vmem:[%s1 + $0xd8] sm:$0xf]
  %v97 = vld [vmem:[%s1 + $0xdc] sm:$0xf]
  %v98 = vld [vmem:[%s1 + $0xe0] sm:$0xf]
  %v99 = vld [vmem:[%s1 + $0xe4] sm:$0xf]
  %v100 = vld [vmem:[%s1 + $0xe8] sm:$0xf]
  %v101 = vld [vmem:[%s1 + $0xec] sm:$0xf]
  %v102 = vld [vmem:[%s1 + $0xf0] sm:$0xf]
  %v103 = vld [vmem:[%s1 + $0xf4] sm:$0xf]
  %v104 = vld [vmem:[%s1 + $0xf8] sm:$0xf]
  %v105 = vld [vmem:[%s1 + $0xfc] sm:$0xf]
  %v106 = vld [vmem:[%s1 + $0x100] sm:$0xf]
  %v107 = vld [vmem:[%s1 + $0x104] sm:$0xf]
  %v108 = vld [vmem:[%s1 + $0x108] sm:$0xf]
  %v109 = vld [vmem:[%s1 + $0x10c] sm:$0xf]
  %v110 = vld [vmem:[%s1 + $0x110] sm:$0xf]
  %v111 = vld [vmem:[%s1 + $0x114] sm:$0xf]
  %v112 = vld [vmem:[%s1 + $0x118] sm:$0xf]
  %v113 = vld [vmem:[%s1 + $0x11c] sm:$0xf]
  %v114 = vld [vmem:[%s1 + $0x120] sm:$0xf]
  %v115 = vld [vmem:[%s1 + $0x124] sm:$0xf]
  %v116 = vld [vmem:[%s1 + $0x128] sm:$0xf]
  %v117 = vld [vmem:[%s1 + $0x12c] sm:$0xf]
  %v118 = vld [vmem:[%s1 + $0x130] sm:$0xf]
  %v119 = vld [vmem:[%s1 + $0x134] sm:$0xf]
  %v120 = vld [vmem:[%s1 + $0x138] sm:$0xf]
  %v121 = vld [vmem:[%s1 + $0x13c] sm:$0xf]
  %v122 = vld [vmem:[%s1 + $0x140] sm:$0xf]
  %v123 = vld [vmem:[%s1 + $0x144] sm:$0xf]
  %v124 = vld [vmem:[%s1 + $0x148] sm:$0xf]
  %v125 = vld [vmem:[%s1 + $0x14c] sm:$0xf]
  %v126 = vld [vmem:[%s1 + $0x150] sm:$0xf]
  %v127 = vld [vmem:[%s1 + $0x154] sm:$0xf]
  %v128 = vld [vmem:[%s1 + $0x158] sm:$0xf]
  %v129 = vld [vmem:[%s1 + $0x15c] sm:$0xf]
  %v130 = vld [vmem:[%s1 + $0x160] sm:$0xf]
  %v131 = vld [vmem:[%s1 + $0x164] sm:$0xf]
  %v132 = vld [vmem:[%s1 + $0x168] sm:$0xf]
  %v133 = vld [vmem:[%s1 + $0x16c] sm:$0xf]
  %v134 = vld [vmem:[%s1 + $0x170] sm:$0xf]
  %v135 = vld [vmem:[%s1 + $0x174] sm:$0xf]
  %v136 = vld [vmem:[%s1 + $0x178] sm:$0xf]
  %v137 = vld [vmem:[%s1 + $0x17c] sm:$0xf]
  %v138 = vld [vmem:[%s1 + $0x180] sm:$0xf]
  %v139 = vld [vmem:[%s1 + $0x184] sm:$0xf]
  %v140 = vld [vmem:[%s1 + $0x188] sm:$0xf]
  %v141 = vld [vmem:[%s1 + $0x18c] sm:$0xf]
  %v142 = vld [vmem:[%s1 + $0x190] sm:$0xf]
  %v143 = vld [vmem:[%s1 + $0x194] sm:$0xf]
  %v144 = vld [vmem:[%s1 + $0x198] sm:$0xf]
  %v145 = vld [vmem:[%s1 + $0x19c] sm:$0xf]
  %v146 = vld [vmem:[%s1 + $0x1a0] sm:$0xf]
  %v147 = vld [vmem:[%s1 + $0x1a4] sm:$0xf]
  %v148 = vld [vmem:[%s1 + $0x1a8] sm:$0xf]
  %v149 = vld [vmem:[%s1 + $0x1ac] sm:$0xf]
  %v150 = vld [vmem:[%s1 + $0x1b0] sm:$0xf]
  %v151 = vld [vmem:[%s1 + $0x1b4] sm:$0xf]
  %v152 = vld [vmem:[%s1 + $0x1b8] sm:$0xf]
  %v153 = vld [vmem:[%s1 + $0x1bc] sm:$0xf]
  %v154 = vld [vmem:[%s1 + $0x1c0] sm:$0xf]
  %v155 = vld [vmem:[%s1 + $0x1c4] sm:$0xf]
  %v156 = vld [vmem:[%s1 + $0x1c8] sm:$0xf]
  %v157 = vld [vmem:[%s1 + $0x1cc] sm:$0xf]
  %v158 = vld [vmem:[%s1 + $0x1d0] sm:$0xf]
  %v159 = vld [vmem:[%s1 + $0x1d4] sm:$0xf]
  %v160 = vld [vmem:[%s1 + $0x1d8] sm:$0xf]
  %v161 = vld [vmem:[%s1 + $0x1dc] sm:$0xf]
  %v162 = vld [vmem:[%s1 + $0x1e0] sm:$0xf]
  %v163 = vld [vmem:[%s1 + $0x1e4] sm:$0xf]
  %v164 = vld [vmem:[%s1 + $0x1e8] sm:$0xf]
  %v165 = vld [vmem:[%s1 + $0x1ec] sm:$0xf]
  %v166 = vld [vmem:[%s1 + $0x1f0] sm:$0xf]
  %v167 = vld [vmem:[%s1 + $0x1f4] sm:$0xf]
  %v168 = vld [vmem:[%s1 + $0x1f8] sm:$0xf]
  %v169 = vld [vmem:[%s1 + $0x1fc] sm:$0xf]
  %v186 = vunpack.c.l.b16 %v26
  %v187 = vunpack.c.h.b16 %v26
  %v188 = vunpack.c.l.b16 %v27
  %v189 = vunpack.c.h.b16 %v27
  %v190 = vunpack.c.l.b16 %v28
  %v191 = vunpack.c.h.b16 %v28
  %v192 = vunpack.c.l.b16 %v29
  %v193 = vunpack.c.h.b16 %v29
  %v194 = vunpack.c.l.b16 %v30
  %v195 = vunpack.c.h.b16 %v30
  %v196 = vunpack.c.l.b16 %v31
  %v197 = vunpack.c.h.b16 %v31
  %v198 = vunpack.c.l.b16 %v32
  %v199 = vunpack.c.h.b16 %v32
  %v200 = vunpack.c.l.b16 %v33
  %v201 = vunpack.c.h.b16 %v33
  %v202 = vunpack.c.l.b16 %v34
  %v203 = vunpack.c.h.b16 %v34
  %v204 = vunpack.c.l.b16 %v35
  %v205 = vunpack.c.h.b16 %v35
  %v206 = vunpack.c.l.b16 %v36
  %v207 = vunpack.c.h.b16 %v36
  %v208 = vunpack.c.l.b16 %v37
  %v209 = vunpack.c.h.b16 %v37
  %v210 = vunpack.c.l.b16 %v38
  %v211 = vunpack.c.h.b16 %v38
  %v212 = vunpack.c.l.b16 %v39
  %v213 = vunpack.c.h.b16 %v39
  %v214 = vunpack.c.l.b16 %v40
  %v215 = vunpack.c.h.b16 %v40
  %v216 = vunpack.c.l.b16 %v41
  %v217 = vunpack.c.h.b16 %v41
  %v218 = vpack.c.b16 %v194, %v186
  %v219 = vpack.c.b16 %v195, %v187
  %v220 = vpack.c.b16 %v196, %v188
  %v221 = vpack.c.b16 %v197, %v189
  %v222 = vpack.c.b16 %v198, %v190
  %v223 = vpack.c.b16 %v199, %v191
  %v224 = vpack.c.b16 %v200, %v192
  %v225 = vpack.c.b16 %v201, %v193
  %v226 = vpack.c.b16 %v210, %v202
  %v227 = vpack.c.b16 %v211, %v203
  %v228 = vpack.c.b16 %v212, %v204
  %v229 = vpack.c.b16 %v213, %v205
  %v230 = vpack.c.b16 %v214, %v206
  %v231 = vpack.c.b16 %v215, %v207
  %v232 = vpack.c.b16 %v216, %v208
  %v233 = vpack.c.b16 %v217, %v209
  %v378 = vunpack.c.l.b16 %v42
  %v379 = vunpack.c.l.b16 %v43
  %v380 = vunpack.c.l.b16 %v44
  %v381 = vunpack.c.l.b16 %v45
  %v382 = vunpack.c.l.b16 %v46
  %v383 = vunpack.c.l.b16 %v47
  %v384 = vunpack.c.l.b16 %v48
  %v385 = vunpack.c.l.b16 %v49
  %v386 = vunpack.c.l.b16 %v50
  %v387 = vunpack.c.l.b16 %v51
  %v388 = vunpack.c.l.b16 %v52
  %v389 = vunpack.c.l.b16 %v53
  %v390 = vunpack.c.l.b16 %v54
  %v391 = vunpack.c.l.b16 %v55
  %v392 = vunpack.c.l.b16 %v56
  %v393 = vunpack.c.l.b16 %v57
  %v394 = vunpack.c.l.b16 %v58
  %v395 = vunpack.c.l.b16 %v59
  %v396 = vunpack.c.l.b16 %v60
  %v397 = vunpack.c.l.b16 %v61
  %v398 = vunpack.c.l.b16 %v62
  %v399 = vunpack.c.l.b16 %v63
  %v400 = vunpack.c.l.b16 %v64
  %v401 = vunpack.c.l.b16 %v65
  %v402 = vunpack.c.l.b16 %v66
  %v403 = vunpack.c.l.b16 %v67
  %v404 = vunpack.c.l.b16 %v68
  %v405 = vunpack.c.l.b16 %v69
  %v406 = vunpack.c.l.b16 %v70
  %v407 = vunpack.c.l.b16 %v71
  %v408 = vunpack.c.l.b16 %v72
  %v409 = vunpack.c.l.b16 %v73
  %v410 = vunpack.c.l.b16 %v74
  %v411 = vunpack.c.l.b16 %v75
  %v412 = vunpack.c.l.b16 %v76
  %v413 = vunpack.c.l.b16 %v77
  %v414 = vunpack.c.l.b16 %v78
  %v415 = vunpack.c.l.b16 %v79
  %v416 = vunpack.c.l.b16 %v80
  %v417 = vunpack.c.l.b16 %v81
  %v418 = vunpack.c.l.b16 %v82
  %v419 = vunpack.c.l.b16 %v83
  %v420 = vunpack.c.l.b16 %v84
  %v421 = vunpack.c.l.b16 %v85
  %v422 = vunpack.c.l.b16 %v86
  %v423 = vunpack.c.l.b16 %v87
  %v424 = vunpack.c.l.b16 %v88
  %v425 = vunpack.c.l.b16 %v89
  %v426 = vunpack.c.l.b16 %v90
  %v427 = vunpack.c.l.b16 %v91
  %v428 = vunpack.c.l.b16 %v92
  %v429 = vunpack.c.l.b16 %v93
  %v430 = vunpack.c.l.b16 %v94
  %v431 = vunpack.c.l.b16 %v95
  %v432 = vunpack.c.l.b16 %v96
  %v433 = vunpack.c.l.b16 %v97
  %v434 = vunpack.c.l.b16 %v98
  %v435 = vunpack.c.l.b16 %v99
  %v436 = vunpack.c.l.b16 %v100
  %v437 = vunpack.c.l.b16 %v101
  %v438 = vunpack.c.l.b16 %v102
  %v439 = vunpack.c.l.b16 %v103
  %v440 = vunpack.c.l.b16 %v104
  %v441 = vunpack.c.l.b16 %v105
  %v442 = vunpack.c.l.b16 %v106
  %v443 = vunpack.c.l.b16 %v107
  %v444 = vunpack.c.l.b16 %v108
  %v445 = vunpack.c.l.b16 %v109
  %v446 = vunpack.c.l.b16 %v110
  %v447 = vunpack.c.l.b16 %v111
  %v448 = vunpack.c.l.b16 %v112
  %v449 = vunpack.c.l.b16 %v113
  %v450 = vunpack.c.l.b16 %v114
  %v451 = vunpack.c.l.b16 %v115
  %v452 = vunpack.c.l.b16 %v116
  %v453 = vunpack.c.l.b16 %v117
  %v454 = vunpack.c.l.b16 %v118
  %v455 = vunpack.c.l.b16 %v119
  %v456 = vunpack.c.l.b16 %v120
  %v457 = vunpack.c.l.b16 %v121
  %v458 = vunpack.c.l.b16 %v122
  %v459 = vunpack.c.l.b16 %v123
  %v460 = vunpack.c.l.b16 %v124
  %v461 = vunpack.c.l.b16 %v125
  %v462 = vunpack.c.l.b16 %v126
  %v463 = vunpack.c.l.b16 %v127
  %v464 = vunpack.c.l.b16 %v128
  %v465 = vunpack.c.l.b16 %v129
  %v466 = vunpack.c.l.b16 %v130
  %v467 = vunpack.c.l.b16 %v131
  %v468 = vunpack.c.l.b16 %v132
  %v469 = vunpack.c.l.b16 %v133
  %v470 = vunpack.c.l.b16 %v134
  %v471 = vunpack.c.l.b16 %v135
  %v472 = vunpack.c.l.b16 %v136
  %v473 = vunpack.c.l.b16 %v137
  %v474 = vunpack.c.l.b16 %v138
  %v475 = vunpack.c.l.b16 %v139
  %v476 = vunpack.c.l.b16 %v140
  %v477 = vunpack.c.l.b16 %v141
  %v478 = vunpack.c.l.b16 %v142
  %v479 = vunpack.c.l.b16 %v143
  %v480 = vunpack.c.l.b16 %v144
  %v481 = vunpack.c.l.b16 %v145
  %v482 = vunpack.c.l.b16 %v146
  %v483 = vunpack.c.l.b16 %v147
  %v484 = vunpack.c.l.b16 %v148
  %v485 = vunpack.c.l.b16 %v149
  %v486 = vunpack.c.l.b16 %v150
  %v487 = vunpack.c.l.b16 %v151
  %v488 = vunpack.c.l.b16 %v152
  %v489 = vunpack.c.l.b16 %v153
  %v490 = vunpack.c.l.b16 %v154
  %v491 = vunpack.c.l.b16 %v155
  %v492 = vunpack.c.l.b16 %v156
  %v493 = vunpack.c.l.b16 %v157
  %v494 = vunpack.c.l.b16 %v158
  %v495 = vunpack.c.l.b16 %v159
  %v496 = vunpack.c.l.b16 %v160
  %v497 = vunpack.c.l.b16 %v161
  %v498 = vunpack.c.l.b16 %v162
  %v499 = vunpack.c.l.b16 %v163
  %v500 = vunpack.c.l.b16 %v164
  %v501 = vunpack.c.l.b16 %v165
  %v502 = vunpack.c.l.b16 %v166
  %v503 = vunpack.c.l.b16 %v167
  %v504 = vunpack.c.l.b16 %v168
  %v505 = vunpack.c.l.b16 %v169
  %v506 = vpack.c.b16 %v379, %v378
  %v507 = vpack.c.b16 %v381, %v380
  %v508 = vpack.c.b16 %v383, %v382
  %v509 = vpack.c.b16 %v385, %v384
  %v510 = vpack.c.b16 %v387, %v386
  %v511 = vpack.c.b16 %v389, %v388
  %v512 = vpack.c.b16 %v391, %v390
  %v513 = vpack.c.b16 %v393, %v392
  %v514 = vpack.c.b16 %v395, %v394
  %v515 = vpack.c.b16 %v397, %v396
  %v516 = vpack.c.b16 %v399, %v398
  %v517 = vpack.c.b16 %v401, %v400
  %v518 = vpack.c.b16 %v403, %v402
  %v519 = vpack.c.b16 %v405, %v404
  %v520 = vpack.c.b16 %v407, %v406
  %v521 = vpack.c.b16 %v409, %v408
  %v522 = vpack.c.b16 %v411, %v410
  %v523 = vpack.c.b16 %v413, %v412
  %v524 = vpack.c.b16 %v415, %v414
  %v525 = vpack.c.b16 %v417, %v416
  %v526 = vpack.c.b16 %v419, %v418
  %v527 = vpack.c.b16 %v421, %v420
  %v528 = vpack.c.b16 %v423, %v422
  %v529 = vpack.c.b16 %v425, %v424
  %v530 = vpack.c.b16 %v427, %v426
  %v531 = vpack.c.b16 %v429, %v428
  %v532 = vpack.c.b16 %v431, %v430
  %v533 = vpack.c.b16 %v433, %v432
  %v534 = vpack.c.b16 %v435, %v434
  %v535 = vpack.c.b16 %v437, %v436
  %v536 = vpack.c.b16 %v439, %v438
  %v537 = vpack.c.b16 %v441, %v440
  %v538 = vpack.c.b16 %v443, %v442
  %v539 = vpack.c.b16 %v445, %v444
  %v540 = vpack.c.b16 %v447, %v446
  %v541 = vpack.c.b16 %v449, %v448
  %v542 = vpack.c.b16 %v451, %v450
  %v543 = vpack.c.b16 %v453, %v452
  %v544 = vpack.c.b16 %v455, %v454
  %v545 = vpack.c.b16 %v457, %v456
  %v546 = vpack.c.b16 %v459, %v458
  %v547 = vpack.c.b16 %v461, %v460
  %v548 = vpack.c.b16 %v463, %v462
  %v549 = vpack.c.b16 %v465, %v464
  %v550 = vpack.c.b16 %v467, %v466
  %v551 = vpack.c.b16 %v469, %v468
  %v552 = vpack.c.b16 %v471, %v470
  %v553 = vpack.c.b16 %v473, %v472
  %v554 = vpack.c.b16 %v475, %v474
  %v555 = vpack.c.b16 %v477, %v476
  %v556 = vpack.c.b16 %v479, %v478
  %v557 = vpack.c.b16 %v481, %v480
  %v558 = vpack.c.b16 %v483, %v482
  %v559 = vpack.c.b16 %v485, %v484
  %v560 = vpack.c.b16 %v487, %v486
  %v561 = vpack.c.b16 %v489, %v488
  %v562 = vpack.c.b16 %v491, %v490
  %v563 = vpack.c.b16 %v493, %v492
  %v564 = vpack.c.b16 %v495, %v494
  %v565 = vpack.c.b16 %v497, %v496
  %v566 = vpack.c.b16 %v499, %v498
  %v567 = vpack.c.b16 %v501, %v500
  %v568 = vpack.c.b16 %v503, %v502
  %v569 = vpack.c.b16 %v505, %v504
  %634 = vmatpush.bf16.msra.mxu0 %v513
  %635 = vmatpush.bf16.msra.mxu0 %v512
  %636 = vmatpush.bf16.msra.mxu0 %v511
  %637 = vmatpush.bf16.msra.mxu0 %v510
  %638 = vmatpush.bf16.msra.mxu0 %v509
  %639 = vmatpush.bf16.msra.mxu0 %v508
  %640 = vmatpush.bf16.msra.mxu0 %v507
  %641 = vmatpush.bf16.msra.mxu0 %v506
  %642 = vmatmul.bf16.gmra.mxu0 %v218
  %v643 = vpop.f32.mrf.mxu0
  %v644 = vadd.f32 0.0, %v643
  %v645 = vpop.f32.mrf.mxu0
  %v646 = vadd.f32 0.0, %v645
  %647 = vmatmul.bf16.gmra.mxu0 %v226
  %v648 = vpop.f32.mrf.mxu0
  %v649 = vadd.f32 0.0, %v648
  %v650 = vpop.f32.mrf.mxu0
  %v651 = vadd.f32 0.0, %v650
  %652 = vdwg.mxu0
  %653 = vmatpush.bf16.msra.mxu0 %v521
  %654 = vmatpush.bf16.msra.mxu0 %v520
  %655 = vmatpush.bf16.msra.mxu0 %v519
  %656 = vmatpush.bf16.msra.mxu0 %v518
  %657 = vmatpush.bf16.msra.mxu0 %v517
  %658 = vmatpush.bf16.msra.mxu0 %v516
  %659 = vmatpush.bf16.msra.mxu0 %v515
  %660 = vmatpush.bf16.msra.mxu0 %v514
  %661 = vmatmul.bf16.gmra.mxu0 %v219
  %v662 = vpop.f32.mrf.mxu0
  %v663 = vadd.f32 %v644, %v662
  %v664 = vpop.f32.mrf.mxu0
  %v665 = vadd.f32 %v646, %v664
  %666 = vmatmul.bf16.gmra.mxu0 %v227
  %v667 = vpop.f32.mrf.mxu0
  %v668 = vadd.f32 %v649, %v667
  %v669 = vpop.f32.mrf.mxu0
  %v670 = vadd.f32 %v651, %v669
  %671 = vdwg.mxu0
  %672 = vmatpush.bf16.msra.mxu0 %v529
  %673 = vmatpush.bf16.msra.mxu0 %v528
  %674 = vmatpush.bf16.msra.mxu0 %v527
  %675 = vmatpush.bf16.msra.mxu0 %v526
  %676 = vmatpush.bf16.msra.mxu0 %v525
  %677 = vmatpush.bf16.msra.mxu0 %v524
  %678 = vmatpush.bf16.msra.mxu0 %v523
  %679 = vmatpush.bf16.msra.mxu0 %v522
  %680 = vmatmul.bf16.gmra.mxu0 %v220
  %v681 = vpop.f32.mrf.mxu0
  %v682 = vadd.f32 %v663, %v681
  %v683 = vpop.f32.mrf.mxu0
  %v684 = vadd.f32 %v665, %v683
  %685 = vmatmul.bf16.gmra.mxu0 %v228
  %v686 = vpop.f32.mrf.mxu0
  %v687 = vadd.f32 %v668, %v686
  %v688 = vpop.f32.mrf.mxu0
  %v689 = vadd.f32 %v670, %v688
  %690 = vdwg.mxu0
  %691 = vmatpush.bf16.msra.mxu0 %v537
  %692 = vmatpush.bf16.msra.mxu0 %v536
  %693 = vmatpush.bf16.msra.mxu0 %v535
  %694 = vmatpush.bf16.msra.mxu0 %v534
  %695 = vmatpush.bf16.msra.mxu0 %v533
  %696 = vmatpush.bf16.msra.mxu0 %v532
  %697 = vmatpush.bf16.msra.mxu0 %v531
  %698 = vmatpush.bf16.msra.mxu0 %v530
  %699 = vmatmul.bf16.gmra.mxu0 %v221
  %v700 = vpop.f32.mrf.mxu0
  %v701 = vadd.f32 %v682, %v700
  %v702 = vpop.f32.mrf.mxu0
  %v703 = vadd.f32 %v684, %v702
  %704 = vmatmul.bf16.gmra.mxu0 %v229
  %v705 = vpop.f32.mrf.mxu0
  %v706 = vadd.f32 %v687, %v705
  %v707 = vpop.f32.mrf.mxu0
  %v708 = vadd.f32 %v689, %v707
  %709 = vdwg.mxu0
  %710 = vmatpush.bf16.msra.mxu0 %v545
  %711 = vmatpush.bf16.msra.mxu0 %v544
  %712 = vmatpush.bf16.msra.mxu0 %v543
  %713 = vmatpush.bf16.msra.mxu0 %v542
  %714 = vmatpush.bf16.msra.mxu0 %v541
  %715 = vmatpush.bf16.msra.mxu0 %v540
  %716 = vmatpush.bf16.msra.mxu0 %v539
  %717 = vmatpush.bf16.msra.mxu0 %v538
  %718 = vmatmul.bf16.gmra.mxu0 %v222
  %v719 = vpop.f32.mrf.mxu0
  %v720 = vadd.f32 %v701, %v719
  %v721 = vpop.f32.mrf.mxu0
  %v722 = vadd.f32 %v703, %v721
  %723 = vmatmul.bf16.gmra.mxu0 %v230
  %v724 = vpop.f32.mrf.mxu0
  %v725 = vadd.f32 %v706, %v724
  %v726 = vpop.f32.mrf.mxu0
  %v727 = vadd.f32 %v708, %v726
  %728 = vdwg.mxu0
  %729 = vmatpush.bf16.msra.mxu0 %v553
  %730 = vmatpush.bf16.msra.mxu0 %v552
  %731 = vmatpush.bf16.msra.mxu0 %v551
  %732 = vmatpush.bf16.msra.mxu0 %v550
  %733 = vmatpush.bf16.msra.mxu0 %v549
  %734 = vmatpush.bf16.msra.mxu0 %v548
  %735 = vmatpush.bf16.msra.mxu0 %v547
  %736 = vmatpush.bf16.msra.mxu0 %v546
  %737 = vmatmul.bf16.gmra.mxu0 %v223
  %v738 = vpop.f32.mrf.mxu0
  %v739 = vadd.f32 %v720, %v738
  %v740 = vpop.f32.mrf.mxu0
  %v741 = vadd.f32 %v722, %v740
  %742 = vmatmul.bf16.gmra.mxu0 %v231
  %v743 = vpop.f32.mrf.mxu0
  %v744 = vadd.f32 %v725, %v743
  %v745 = vpop.f32.mrf.mxu0
  %v746 = vadd.f32 %v727, %v745
  %747 = vdwg.mxu0
  %748 = vmatpush.bf16.msra.mxu0 %v561
  %749 = vmatpush.bf16.msra.mxu0 %v560
  %750 = vmatpush.bf16.msra.mxu0 %v559
  %751 = vmatpush.bf16.msra.mxu0 %v558
  %752 = vmatpush.bf16.msra.mxu0 %v557
  %753 = vmatpush.bf16.msra.mxu0 %v556
  %754 = vmatpush.bf16.msra.mxu0 %v555
  %755 = vmatpush.bf16.msra.mxu0 %v554
  %756 = vmatmul.bf16.gmra.mxu0 %v224
  %v757 = vpop.f32.mrf.mxu0
  %v758 = vadd.f32 %v739, %v757
  %v759 = vpop.f32.mrf.mxu0
  %v760 = vadd.f32 %v741, %v759
  %761 = vmatmul.bf16.gmra.mxu0 %v232
  %v762 = vpop.f32.mrf.mxu0
  %v763 = vadd.f32 %v744, %v762
  %v764 = vpop.f32.mrf.mxu0
  %v765 = vadd.f32 %v746, %v764
  %766 = vdwg.mxu0
  %767 = vmatpush.bf16.msra.mxu0 %v569
  %768 = vmatpush.bf16.msra.mxu0 %v568
  %769 = vmatpush.bf16.msra.mxu0 %v567
  %770 = vmatpush.bf16.msra.mxu0 %v566
  %771 = vmatpush.bf16.msra.mxu0 %v565
  %772 = vmatpush.bf16.msra.mxu0 %v564
  %773 = vmatpush.bf16.msra.mxu0 %v563
  %774 = vmatpush.bf16.msra.mxu0 %v562
  %775 = vmatmul.bf16.gmra.mxu0 %v225
  %v776 = vpop.f32.mrf.mxu0
  %v777 = vadd.f32 %v758, %v776
  %v778 = vpop.f32.mrf.mxu0
  %v779 = vadd.f32 %v760, %v778
  %780 = vmatmul.bf16.gmra.mxu0 %v233
  %v781 = vpop.f32.mrf.mxu0
  %v782 = vadd.f32 %v763, %v781
  %v783 = vpop.f32.mrf.mxu0
  %v784 = vadd.f32 %v765, %v783
  %785 = vdwg.mxu0
  %v786 = vadd.f32 %v22, %v777
  %v787 = vadd.f32 %v23, %v779
  %v788 = vadd.f32 %v24, %v782
  %v789 = vadd.f32 %v25, %v784
  %790 = vst [vmem:[#allocation2] sm:$0xff] %v786
  %791 = vst [vmem:[#allocation2 + $0x8] sm:$0xff] %v787
  %792 = vst [vmem:[#allocation2 + $0x10] sm:$0xff] %v788
  %793 = vst [vmem:[#allocation2 + $0x18] sm:$0xff] %v789
  // Predicated region
  $region14: #{discriminator_forward.12} parent=0 // pred_check
    %p794 = pneg %p14
  $region15: #{discriminator_forward.12} parent=0 // pred_check_branch
    %796 = sbr.rel (%p794) target = $region17
  $region16: #{discriminator_forward.12} parent=0 // pred_region
    %v797 = vld [vmem:[#allocation2] sm:$0xff]
    %v798 = vld [vmem:[#allocation2 + $0x8] sm:$0xff]
    %v799 = vld [vmem:[#allocation2 + $0x10] sm:$0xff]
    %v800 = vld [vmem:[#allocation2 + $0x18] sm:$0xff]
    %v801 = vpack.c.bf16 %v797, %v797
    %v802 = vpack.c.bf16 %v798, %v798
    %v803 = vpack.c.bf16 %v799, %v799
    %v804 = vpack.c.bf16 %v800, %v800
    %805 = vst [vmem:[%s2] sm:$0xf] %v801
    %806 = vst [vmem:[%s2 + $0x4] sm:$0xf] %v802
    %807 = vst [vmem:[%s2 + $0x8] sm:$0xf] %v803
    %808 = vst [vmem:[%s2 + $0xc] sm:$0xf] %v804
    %v809 = vadd.f32 %v797, %v798
    %v810 = vadd.f32 %v809, %v799
    %v811 = vadd.f32 %v810, %v800
    %v812 = vrot.slane %v811, 4
    %v813 = vadd.f32 %v811, %v812
    %v814 = vrot.slane %v813, 2
    %v815 = vadd.f32 %v813, %v814
    %v816 = vrot.slane %v815, 1
    %v817 = vadd.f32 %v815, %v816
    %818 = vst [vmem:[%s3] sm:$0x1] %v817
    %v819 = vmul.f32 %v797, %v797
    %v820 = vmul.f32 %v798, %v798
    %v821 = vmul.f32 %v799, %v799
    %v822 = vmul.f32 %v800, %v800
    %v823 = vadd.f32 %v819, %v820
    %v824 = vadd.f32 %v823, %v821
    %v825 = vadd.f32 %v824, %v822
    %v826 = vrot.slane %v825, 4
    %v827 = vadd.f32 %v825, %v826
    %v828 = vrot.slane %v827, 2
    %v829 = vadd.f32 %v827, %v828
    %v830 = vrot.slane %v829, 1
    %v831 = vadd.f32 %v829, %v830
    %832 = vst [vmem:[%s4] sm:$0x1] %v831
  $region17: #{discriminator_forward.12} parent=0 // pred_fallthru
    _
  // Predicated region
  $region18: #{discriminator_forward.12} parent=0 // pred_check
    _
  $region19: #{discriminator_forward.12} parent=0 // pred_check_branch
    %834 = sbr.rel (0) target = $region21
  $region20: #{discriminator_forward.12} parent=0 // pred_region
    _
  $region21: #{discriminator_forward.12} parent=0 // pred_fallthru
    _
  // Predicated region
  $region22: #{discriminator_forward.12} parent=0 // pred_check
    _
  $region23: #{discriminator_forward.12} parent=0 // pred_check_branch
    %836 = sbr.rel (0) target = $region25
  $region24: #{discriminator_forward.12} parent=0 // pred_region
    _
  $region25: #{discriminator_forward.12} parent=0 // pred_fallthru
    _
  // Predicated region
  $region26: #{discriminator_forward.12} parent=0 // pred_check
    _
  $region27: #{discriminator_forward.12} parent=0 // pred_check_branch
    %838 = sbr.rel (0) target = $region29
  $region28: #{discriminator_forward.12} parent=0 // pred_region
    _
  $region29: #{discriminator_forward.12} parent=0 // pred_fallthru
    _
  // Predicated region
  $region30: #{discriminator_forward.12} parent=0 // pred_check
    _
  $region31: #{discriminator_forward.12} parent=0 // pred_check_branch
    %840 = sbr.rel (0) target = $region33
  $region32: #{discriminator_forward.12} parent=0 // pred_region
    _
  $region33: #{discriminator_forward.12} parent=0 // pred_fallthru
    _
  // Predicated region
  $region34: #{discriminator_forward.12} parent=0 // pred_check
    _
  $region35: #{discriminator_forward.12} parent=0 // pred_check_branch
    %842 = sbr.rel (0) target = $region37
  $region36: #{discriminator_forward.12} parent=0 // pred_region
    _
  $region37: #{discriminator_forward.12} parent=0 // pred_fallthru
    _
  // Predicated region
  $region38: #{discriminator_forward.12} parent=0 // pred_check
    _
  $region39: #{discriminator_forward.12} parent=0 // pred_check_branch
    %844 = sbr.rel (0) target = $region41
  $region40: #{discriminator_forward.12} parent=0 // pred_region
    _
  $region41: #{discriminator_forward.12} parent=0 // pred_fallthru
    _

</llo_original>
